<compile_context>
chip_gen: v6e
topology: v6e:2x2x1
jax: 0.10.0
libtpu: 0.0.40
codegen_flags: <defaults>
</compile_context>

<pallas_src>
import functools

import jax
import jax.numpy as jnp
import numpy as np
from jax.experimental import pallas as pl
from jax.experimental.pallas import tpu as pltpu


# ----------------------------------------------------------------------------
# Fused Pallas kernel: in-kernel im2col + phase-decomposed ConvT + BN + ReLU
# ----------------------------------------------------------------------------
def _gblock_kernel(w_ref, x_ref, m_ref, g_ref, b_ref, o_ref, p_scr, *,
                   cin, cg, l, wp, inv_count, eps):
    """One output-channel group.

    w_ref : (1, 4*cg, Kpad) bf16  phase weights for this group, rows = ph*cg + c
    x_ref : (N, Cin, Lpad)  bf16  1-padded input, rows flattened (row width wp)
    m_ref : (1, L)          f32   1.0 where the flat column is a real pixel
    g_ref : (1, cg, 1)      f32   gamma (this group's channels)
    b_ref : (1, cg, 1)      f32   beta
    o_ref : (N, 4*cg, L)          normalized + ReLU phase-planar output
    p_scr : (Kpad, L)       bf16  VMEM im2col scratch (per-sample patches)
    """
    n = x_ref.shape[0]
    rg = 4 * cg
    k = 9 * cin
    kpad = p_scr.shape[0]

    w = w_ref[0]                                   # (rg, kpad) bf16
    mask = m_ref[...]                              # (1, l)     f32

    # Zero the K padding rows (weights' pad columns are also zero).
    if kpad > k:
        p_scr[k:kpad, :] = jnp.zeros((kpad - k, l), p_scr.dtype)

    s = jnp.zeros((rg, 1), jnp.float32)            # per-row sum
    q = jnp.zeros((rg, 1), jnp.float32)            # per-row sum of squares
    rs = []
    for i in range(n):                             # static unroll over small batch
        # In-kernel im2col: 9 shifted flat views of the padded sample written
        # into VMEM scratch (no 9x HBM materialization, no wrapper-side copies).
        for t in range(9):
            off = (t // 3) * wp + (t % 3)
            p_scr[t * cin:(t + 1) * cin, :] = x_ref[i, :, off:off + l]
        # Transposed conv for all 4 sub-pixel phases of this channel group:
        # a single MXU matmul per sample (bf16 operands, f32 accumulate).
        r = jnp.dot(w, p_scr[...], preferred_element_type=jnp.float32)  # (rg, l)
        rs.append(r)
        # BN batch stats via lane reductions; wrap (garbage) columns masked out.
        rm = r * mask
        s = s + jnp.sum(rm, axis=-1, keepdims=True)
        q = q + jnp.sum(rm * r, axis=-1, keepdims=True)

    # Per-channel statistics: combine the 4 phase rows of each channel.
    s_c = s[0:cg] + s[cg:2 * cg] + s[2 * cg:3 * cg] + s[3 * cg:4 * cg]
    q_c = q[0:cg] + q[cg:2 * cg] + q[2 * cg:3 * cg] + q[3 * cg:4 * cg]
    mean = s_c * inv_count
    var = jnp.maximum(q_c * inv_count - mean * mean, 0.0)   # clamp f32 cancellation
    scale_c = g_ref[0] * jax.lax.rsqrt(var + eps)            # (cg, 1)
    shift_c = b_ref[0] - mean * scale_c                      # (cg, 1)

    # Normalize + ReLU + store (lane-dense stores, per-phase channel slices).
    for i in range(n):
        for ph in range(4):
            seg = rs[i][ph * cg:(ph + 1) * cg, :]            # (cg, l) f32
            y = jnp.maximum(seg * scale_c + shift_c, 0.0)
            o_ref[i, ph * cg:(ph + 1) * cg, :] = y.astype(o_ref.dtype)


# ----------------------------------------------------------------------------
# Wrapper-side parameter prep + pallas_call + pixel shuffle
# ----------------------------------------------------------------------------
def _phase_weight(w_iohw):
    """ConvTranspose2d(k=4,s=2,p=1) weight (Cin,Cout,4,4) -> (4, Cout, 9, Cin).

    Entry [py*2+px, co, (py+dh)*3+(px+dw), ci] = W[ci, co, 3-py-2dh, 3-px-2dw], so
      Y[n,co,2a+py,2b+px] = sum_{dh,dw,ci} wall[ph,co,tap,ci] * Xpad[n,ci,a+oh,b+ow]
    with (oh,ow) = (py+dh, px+dw) the shared 3x3 taps of the 1-padded input.
    """
    cin, cout, _, _ = w_iohw.shape
    wall = jnp.zeros((4, cout, 9, cin), w_iohw.dtype)
    for py in range(2):
        for px in range(2):
            for dh in range(2):
                for dw in range(2):
                    tap = (py + dh) * 3 + (px + dw)
                    blk = w_iohw[:, :, 3 - py - 2 * dh, 3 - px - 2 * dw].T
                    wall = wall.at[py * 2 + px, :, tap, :].set(blk)
    return wall


def g_block_forward(x_nchw, params, eps=1e-5, channel_groups=2):
    """Forward of G_block: ReLU(BatchNorm2d(ConvTranspose2d(x, 4, 2, 1)))."""
    n, cin, h, w = x_nchw.shape
    cout = params["w_up"].shape[1]
    assert cout % channel_groups == 0
    grp = channel_groups
    cg = cout // grp
    rg = 4 * cg
    wp = w + 2                      # padded row width
    l = h * wp                      # flat spatial positions computed per phase
    lpad = (h + 3) * wp             # +2 extra zero rows keep every tap slice in bounds
    k = 9 * cin
    kpad = -(-k // 8) * 8           # pad contraction dim to a sublane multiple

    # Weights: (Cin,Cout,4,4) -> (grp, 4*cg, Kpad) bf16; rows ordered (phase, channel).
    wall = _phase_weight(params["w_up"]).reshape(4, cout, k)
    wall = wall.reshape(4, grp, cg, k).transpose(1, 0, 2, 3).reshape(grp, rg, k)
    wall = jnp.pad(wall, ((0, 0), (0, 0), (0, kpad - k))).astype(jnp.bfloat16)

    # Input: one small pad + flatten + bf16 cast pass (no 9x im2col in HBM).
    xp = jnp.pad(x_nchw, ((0, 0), (0, 0), (1, 2), (1, 1)))
    xflat = xp.reshape(n, cin, lpad).astype(jnp.bfloat16)

    # Flat columns with (m % wp) >= w are row-wrap garbage -> excluded from BN stats.
    mask = jnp.asarray((np.arange(l) % wp) < w, dtype=jnp.float32).reshape(1, l)

    gamma = params["gamma"].astype(jnp.float32).reshape(grp, cg, 1)
    beta = params["beta"].astype(jnp.float32).reshape(grp, cg, 1)

    kern = functools.partial(_gblock_kernel, cin=cin, cg=cg, l=l, wp=wp,
                             inv_count=1.0 / (4.0 * n * h * w), eps=eps)

    out = pl.pallas_call(
        kern,
        out_shape=jax.ShapeDtypeStruct((n, grp * rg, l), x_nchw.dtype),
        grid_spec=pltpu.PrefetchScalarGridSpec(
            num_scalar_prefetch=0,
            grid=(grp,),   # channel groups: BN stats stay group-local -> safe parallel
            in_specs=[
                pl.BlockSpec((1, rg, kpad), lambda g: (g, 0, 0)),      # weights
                pl.BlockSpec((n, cin, lpad), lambda g: (0, 0, 0)),     # padded input
                pl.BlockSpec((1, l), lambda g: (0, 0)),                # validity mask
                pl.BlockSpec((1, cg, 1), lambda g: (g, 0, 0)),         # gamma
                pl.BlockSpec((1, cg, 1), lambda g: (g, 0, 0)),         # beta
            ],
            out_specs=pl.BlockSpec((n, rg, l), lambda g: (0, g, 0)),
            scratch_shapes=[pltpu.VMEM((kpad, l), jnp.bfloat16)],
        ),
        compiler_params=pltpu.CompilerParams(
            dimension_semantics=("parallel",),   # v7x megacore over channel groups
            vmem_limit_bytes=32 * 1024 * 1024),  # safe on v7x's 64 MiB VMEM
    )(wall, xflat, mask, gamma, beta)

    # Pixel shuffle + crop of the wrap columns: one XLA transpose of the output.
    out = out.reshape(n, grp, 2, 2, cg, h, wp)        # (n, g, py, px, c, a, b)
    out = out.transpose(0, 1, 4, 5, 2, 6, 3)          # (n, g, c, a, py, b, px)
    out = out[:, :, :, :, :, :w, :]
    return out.reshape(n, cout, 2 * h, 2 * w)


# ----------------------------------------------------------------------------
# Pure-JAX reference (zero-stuffed transposed conv + BN + ReLU) for checking
# ----------------------------------------------------------------------------
def reference_forward(x_nchw, params, eps=1e-5):
    x = jnp.transpose(x_nchw, (0, 2, 3, 1))                        # NHWC
    n, h, w, cin = x.shape
    up = jnp.zeros((n, 2 * h - 1, 2 * w - 1, cin), x.dtype)
    up = up.at[:, ::2, ::2, :].set(x)
    up = jnp.pad(up, ((0, 0), (2, 2), (2, 2), (0, 0)))             # pad = k-1-p
    w_hwio = jnp.flip(params["w_up"], axis=(2, 3)).transpose(2, 3, 0, 1)
    y = jax.lax.conv_general_dilated(
        up, w_hwio, (1, 1), "VALID",
        dimension_numbers=("NHWC", "HWIO", "NHWC"))
    mean = jnp.mean(y, axis=(0, 1, 2), keepdims=True)
    var = jnp.mean((y - mean) ** 2, axis=(0, 1, 2), keepdims=True)
    yn = (y - mean) * jax.lax.rsqrt(var + eps)
    yn = yn * params["gamma"].reshape(1, 1, 1, -1) + params["beta"].reshape(1, 1, 1, -1)
    return jnp.transpose(jnp.maximum(yn, 0.0), (0, 3, 1, 2))


def init_params(key, cin, cout):
    k0, k1, k2 = jax.random.split(key, 3)
    f32 = jnp.float32
    return {
        # ConvTranspose2d(in, out, 4, 2, 1, bias=False): weight (Cin, Cout, 4, 4)
        "w_up": jax.random.normal(k0, (cin, cout, 4, 4), f32) / np.sqrt(cin * 16),
        # BatchNorm2d(out)
        "gamma": 1.0 + 0.1 * jax.random.normal(k1, (cout,), f32),
        "beta": 0.1 * jax.random.normal(k2, (cout,), f32),
    }


if __name__ == "__main__":
    key = jax.random.PRNGKey(0)
    kx, kp = jax.random.split(key)

    N, Cin, H, W = 2, 4, 16, 16
    Cout = 8
    x = jax.random.normal(kx, (N, Cin, H, W), jnp.float32)   # NCHW, like PyTorch
    params = init_params(kp, Cin, Cout)

    out = jax.block_until_ready(jax.jit(g_block_forward)(x, params))

    assert out.shape == (N, Cout, 2 * H, 2 * W), out.shape
    assert bool(jnp.all(jnp.isfinite(out)))

    # Tolerance covers bf16 MXU operands (accumulation and BN math are f32).
    ref = jax.block_until_ready(reference_forward(x, params))
    np.testing.assert_allclose(np.asarray(out), np.asarray(ref), rtol=3e-2, atol=3e-2)

    print("KERNEL_OK")
</pallas_src>

<mosaic_0001>
module attributes {stable_mosaic.version = 11 : i64} {
  func.func @_gblock_kernel(%arg0: i32, %arg1: memref<1x16x40xbf16, #tpu.memory_space<vmem>>, %arg2: memref<2x4x342xbf16, #tpu.memory_space<vmem>>, %arg3: memref<1x288xf32, #tpu.memory_space<vmem>>, %arg4: memref<1x4x1xf32, #tpu.memory_space<vmem>>, %arg5: memref<1x4x1xf32, #tpu.memory_space<vmem>>, %arg6: memref<2x16x288xf32, #tpu.memory_space<vmem>>, %arg7: memref<40x288xbf16, #tpu.memory_space<vmem>>) attributes {dimension_semantics = [#tpu.dimension_semantics<parallel>], iteration_bounds = array<i64: 2>, scalar_prefetch = 0 : i64, scratch_operands = 1 : i64, tpu.core_type = #tpu.core_type<tc>, window_params = [{transform_indices = @transform_0, window_bounds = array<i64: 1, 16, 40>}, {pipeline_mode = #tpu.pipeline_mode<synchronous>, transform_indices = @transform_1, window_bounds = array<i64: 2, 4, 342>}, {pipeline_mode = #tpu.pipeline_mode<synchronous>, transform_indices = @transform_2, window_bounds = array<i64: 1, 288>}, {transform_indices = @transform_3, window_bounds = array<i64: 1, 4, 1>}, {transform_indices = @transform_4, window_bounds = array<i64: 1, 4, 1>}, {transform_indices = @transform_5, window_bounds = array<i64: 2, 16, 288>}]} {
    %c0 = arith.constant 0 : index
    %c0_0 = arith.constant 0 : index
    %c0_1 = arith.constant 0 : index
    %0 = vector.load %arg1[%c0, %c0_0, %c0_1] : memref<1x16x40xbf16, #tpu.memory_space<vmem>>, vector<1x16x40xbf16>
    %1 = vector.shape_cast %0 : vector<1x16x40xbf16> to vector<16x40xbf16>
    %c0_2 = arith.constant 0 : index
    %c0_3 = arith.constant 0 : index
    %2 = vector.load %arg3[%c0_2, %c0_3] : memref<1x288xf32, #tpu.memory_space<vmem>>, vector<1x288xf32>
    %cst = arith.constant 0.000000e+00 : bf16
    %3 = vector.broadcast %cst : bf16 to vector<4x288xbf16>
    %c36 = arith.constant 36 : index
    %c0_4 = arith.constant 0 : index
    %4 = vector.load %arg7[%c36, %c0_4] : memref<40x288xbf16, #tpu.memory_space<vmem>>, vector<4x288xbf16>
    tpu.vector_store %arg7[%c36, %c0_4], %3 {strides = array<i32>} : memref<40x288xbf16, #tpu.memory_space<vmem>>, vector<4x288xbf16>,
    %cst_5 = arith.constant 0.000000e+00 : f32
    %5 = vector.broadcast %cst_5 : f32 to vector<16x1xf32>
    %cst_6 = arith.constant 0.000000e+00 : f32
    %6 = vector.broadcast %cst_6 : f32 to vector<16x1xf32>
    %c0_7 = arith.constant 0 : index
    %c0_8 = arith.constant 0 : index
    %c0_9 = arith.constant 0 : index
    %7 = vector.load %arg2[%c0_7, %c0_8, %c0_9] : memref<2x4x342xbf16, #tpu.memory_space<vmem>>, vector<1x4x288xbf16>
    %8 = vector.shape_cast %7 : vector<1x4x288xbf16> to vector<4x288xbf16>
    %c0_10 = arith.constant 0 : index
    %c0_11 = arith.constant 0 : index
    %9 = vector.load %arg7[%c0_10, %c0_11] : memref<40x288xbf16, #tpu.memory_space<vmem>>, vector<4x288xbf16>
    tpu.vector_store %arg7[%c0_10, %c0_11], %8 {strides = array<i32>} : memref<40x288xbf16, #tpu.memory_space<vmem>>, vector<4x288xbf16>,
    %c0_12 = arith.constant 0 : index
    %c0_13 = arith.constant 0 : index
    %c1 = arith.constant 1 : index
    %10 = vector.load %arg2[%c0_12, %c0_13, %c1] : memref<2x4x342xbf16, #tpu.memory_space<vmem>>, vector<1x4x288xbf16>
    %11 = vector.shape_cast %10 : vector<1x4x288xbf16> to vector<4x288xbf16>
    %c4 = arith.constant 4 : index
    %c0_14 = arith.constant 0 : index
    %12 = vector.load %arg7[%c4, %c0_14] : memref<40x288xbf16, #tpu.memory_space<vmem>>, vector<4x288xbf16>
    tpu.vector_store %arg7[%c4, %c0_14], %11 {strides = array<i32>} : memref<40x288xbf16, #tpu.memory_space<vmem>>, vector<4x288xbf16>,
    %c0_15 = arith.constant 0 : index
    %c0_16 = arith.constant 0 : index
    %c2 = arith.constant 2 : index
    %13 = vector.load %arg2[%c0_15, %c0_16, %c2] : memref<2x4x342xbf16, #tpu.memory_space<vmem>>, vector<1x4x288xbf16>
    %14 = vector.shape_cast %13 : vector<1x4x288xbf16> to vector<4x288xbf16>
    %c8 = arith.constant 8 : index
    %c0_17 = arith.constant 0 : index
    %15 = vector.load %arg7[%c8, %c0_17] : memref<40x288xbf16, #tpu.memory_space<vmem>>, vector<4x288xbf16>
    tpu.vector_store %arg7[%c8, %c0_17], %14 {strides = array<i32>} : memref<40x288xbf16, #tpu.memory_space<vmem>>, vector<4x288xbf16>,
    %c0_18 = arith.constant 0 : index
    %c0_19 = arith.constant 0 : index
    %c18 = arith.constant 18 : index
    %16 = vector.load %arg2[%c0_18, %c0_19, %c18] : memref<2x4x342xbf16, #tpu.memory_space<vmem>>, vector<1x4x288xbf16>
    %17 = vector.shape_cast %16 : vector<1x4x288xbf16> to vector<4x288xbf16>
    %c12 = arith.constant 12 : index
    %c0_20 = arith.constant 0 : index
    %18 = vector.load %arg7[%c12, %c0_20] : memref<40x288xbf16, #tpu.memory_space<vmem>>, vector<4x288xbf16>
    tpu.vector_store %arg7[%c12, %c0_20], %17 {strides = array<i32>} : memref<40x288xbf16, #tpu.memory_space<vmem>>, vector<4x288xbf16>,
    %c0_21 = arith.constant 0 : index
    %c0_22 = arith.constant 0 : index
    %c19 = arith.constant 19 : index
    %19 = vector.load %arg2[%c0_21, %c0_22, %c19] : memref<2x4x342xbf16, #tpu.memory_space<vmem>>, vector<1x4x288xbf16>
    %20 = vector.shape_cast %19 : vector<1x4x288xbf16> to vector<4x288xbf16>
    %c16 = arith.constant 16 : index
    %c0_23 = arith.constant 0 : index
    %21 = vector.load %arg7[%c16, %c0_23] : memref<40x288xbf16, #tpu.memory_space<vmem>>, vector<4x288xbf16>
    tpu.vector_store %arg7[%c16, %c0_23], %20 {strides = array<i32>} : memref<40x288xbf16, #tpu.memory_space<vmem>>, vector<4x288xbf16>,
    %c0_24 = arith.constant 0 : index
    %c0_25 = arith.constant 0 : index
    %c20 = arith.constant 20 : index
    %22 = vector.load %arg2[%c0_24, %c0_25, %c20] : memref<2x4x342xbf16, #tpu.memory_space<vmem>>, vector<1x4x288xbf16>
    %23 = vector.shape_cast %22 : vector<1x4x288xbf16> to vector<4x288xbf16>
    %c20_26 = arith.constant 20 : index
    %c0_27 = arith.constant 0 : index
    %24 = vector.load %arg7[%c20_26, %c0_27] : memref<40x288xbf16, #tpu.memory_space<vmem>>, vector<4x288xbf16>
    tpu.vector_store %arg7[%c20_26, %c0_27], %23 {strides = array<i32>} : memref<40x288xbf16, #tpu.memory_space<vmem>>, vector<4x288xbf16>,
    %c0_28 = arith.constant 0 : index
    %c0_29 = arith.constant 0 : index
    %c36_30 = arith.constant 36 : index
    %25 = vector.load %arg2[%c0_28, %c0_29, %c36_30] : memref<2x4x342xbf16, #tpu.memory_space<vmem>>, vector<1x4x288xbf16>
    %26 = vector.shape_cast %25 : vector<1x4x288xbf16> to vector<4x288xbf16>
    %c24 = arith.constant 24 : index
    %c0_31 = arith.constant 0 : index
    %27 = vector.load %arg7[%c24, %c0_31] : memref<40x288xbf16, #tpu.memory_space<vmem>>, vector<4x288xbf16>
    tpu.vector_store %arg7[%c24, %c0_31], %26 {strides = array<i32>} : memref<40x288xbf16, #tpu.memory_space<vmem>>, vector<4x288xbf16>,
    %c0_32 = arith.constant 0 : index
    %c0_33 = arith.constant 0 : index
    %c37 = arith.constant 37 : index
    %28 = vector.load %arg2[%c0_32, %c0_33, %c37] : memref<2x4x342xbf16, #tpu.memory_space<vmem>>, vector<1x4x288xbf16>
    %29 = vector.shape_cast %28 : vector<1x4x288xbf16> to vector<4x288xbf16>
    %c28 = arith.constant 28 : index
    %c0_34 = arith.constant 0 : index
    %30 = vector.load %arg7[%c28, %c0_34] : memref<40x288xbf16, #tpu.memory_space<vmem>>, vector<4x288xbf16>
    tpu.vector_store %arg7[%c28, %c0_34], %29 {strides = array<i32>} : memref<40x288xbf16, #tpu.memory_space<vmem>>, vector<4x288xbf16>,
    %c0_35 = arith.constant 0 : index
    %c0_36 = arith.constant 0 : index
    %c38 = arith.constant 38 : index
    %31 = vector.load %arg2[%c0_35, %c0_36, %c38] : memref<2x4x342xbf16, #tpu.memory_space<vmem>>, vector<1x4x288xbf16>
    %32 = vector.shape_cast %31 : vector<1x4x288xbf16> to vector<4x288xbf16>
    %c32 = arith.constant 32 : index
    %c0_37 = arith.constant 0 : index
    %33 = vector.load %arg7[%c32, %c0_37] : memref<40x288xbf16, #tpu.memory_space<vmem>>, vector<4x288xbf16>
    tpu.vector_store %arg7[%c32, %c0_37], %32 {strides = array<i32>} : memref<40x288xbf16, #tpu.memory_space<vmem>>, vector<4x288xbf16>,
    %c0_38 = arith.constant 0 : index
    %c0_39 = arith.constant 0 : index
    %34 = vector.load %arg7[%c0_38, %c0_39] : memref<40x288xbf16, #tpu.memory_space<vmem>>, vector<40x288xbf16>
    %cst_40 = arith.constant dense<0.000000e+00> : vector<16x288xf32>
    %35 = tpu.matmul %1, %34, %cst_40 {dimension_numbers = #tpu.dot_dimension_numbers<[1], [0], [0], [1], [0, 0, 1, 1], [], []>} : vector<16x40xbf16>, vector<40x288xbf16>, vector<16x288xf32> -> vector<16x288xf32>
    %36 = vector.broadcast %2 : vector<1x288xf32> to vector<16x288xf32>
    %37 = arith.mulf %35, %36 : vector<16x288xf32>
    %cst_41 = arith.constant dense<0.000000e+00> : vector<16xf32>
    %38 = vector.multi_reduction <add>, %37, %cst_41 [1] : vector<16x288xf32> to vector<16xf32>
    %39 = vector.shape_cast %38 : vector<16xf32> to vector<16x1xf32>
    %40 = arith.addf %5, %39 : vector<16x1xf32>
    %41 = arith.mulf %37, %35 : vector<16x288xf32>
    %cst_42 = arith.constant dense<0.000000e+00> : vector<16xf32>
    %42 = vector.multi_reduction <add>, %41, %cst_42 [1] : vector<16x288xf32> to vector<16xf32>
    %43 = vector.shape_cast %42 : vector<16xf32> to vector<16x1xf32>
    %44 = arith.addf %6, %43 : vector<16x1xf32>
    %c1_43 = arith.constant 1 : index
    %c0_44 = arith.constant 0 : index
    %c0_45 = arith.constant 0 : index
    %45 = vector.load %arg2[%c1_43, %c0_44, %c0_45] : memref<2x4x342xbf16, #tpu.memory_space<vmem>>, vector<1x4x288xbf16>
    %46 = vector.shape_cast %45 : vector<1x4x288xbf16> to vector<4x288xbf16>
    %c0_46 = arith.constant 0 : index
    %c0_47 = arith.constant 0 : index
    %47 = vector.load %arg7[%c0_46, %c0_47] : memref<40x288xbf16, #tpu.memory_space<vmem>>, vector<4x288xbf16>
    tpu.vector_store %arg7[%c0_46, %c0_47], %46 {strides = array<i32>} : memref<40x288xbf16, #tpu.memory_space<vmem>>, vector<4x288xbf16>,
    %c1_48 = arith.constant 1 : index
    %c0_49 = arith.constant 0 : index
    %c1_50 = arith.constant 1 : index
    %48 = vector.load %arg2[%c1_48, %c0_49, %c1_50] : memref<2x4x342xbf16, #tpu.memory_space<vmem>>, vector<1x4x288xbf16>
    %49 = vector.shape_cast %48 : vector<1x4x288xbf16> to vector<4x288xbf16>
    %c4_51 = arith.constant 4 : index
    %c0_52 = arith.constant 0 : index
    %50 = vector.load %arg7[%c4_51, %c0_52] : memref<40x288xbf16, #tpu.memory_space<vmem>>, vector<4x288xbf16>
    tpu.vector_store %arg7[%c4_51, %c0_52], %49 {strides = array<i32>} : memref<40x288xbf16, #tpu.memory_space<vmem>>, vector<4x288xbf16>,
    %c1_53 = arith.constant 1 : index
    %c0_54 = arith.constant 0 : index
    %c2_55 = arith.constant 2 : index
    %51 = vector.load %arg2[%c1_53, %c0_54, %c2_55] : memref<2x4x342xbf16, #tpu.memory_space<vmem>>, vector<1x4x288xbf16>
    %52 = vector.shape_cast %51 : vector<1x4x288xbf16> to vector<4x288xbf16>
    %c8_56 = arith.constant 8 : index
    %c0_57 = arith.constant 0 : index
    %53 = vector.load %arg7[%c8_56, %c0_57] : memref<40x288xbf16, #tpu.memory_space<vmem>>, vector<4x288xbf16>
    tpu.vector_store %arg7[%c8_56, %c0_57], %52 {strides = array<i32>} : memref<40x288xbf16, #tpu.memory_space<vmem>>, vector<4x288xbf16>,
    %c1_58 = arith.constant 1 : index
    %c0_59 = arith.constant 0 : index
    %c18_60 = arith.constant 18 : index
    %54 = vector.load %arg2[%c1_58, %c0_59, %c18_60] : memref<2x4x342xbf16, #tpu.memory_space<vmem>>, vector<1x4x288xbf16>
    %55 = vector.shape_cast %54 : vector<1x4x288xbf16> to vector<4x288xbf16>
    %c12_61 = arith.constant 12 : index
    %c0_62 = arith.constant 0 : index
    %56 = vector.load %arg7[%c12_61, %c0_62] : memref<40x288xbf16, #tpu.memory_space<vmem>>, vector<4x288xbf16>
    tpu.vector_store %arg7[%c12_61, %c0_62], %55 {strides = array<i32>} : memref<40x288xbf16, #tpu.memory_space<vmem>>, vector<4x288xbf16>,
    %c1_63 = arith.constant 1 : index
    %c0_64 = arith.constant 0 : index
    %c19_65 = arith.constant 19 : index
    %57 = vector.load %arg2[%c1_63, %c0_64, %c19_65] : memref<2x4x342xbf16, #tpu.memory_space<vmem>>, vector<1x4x288xbf16>
    %58 = vector.shape_cast %57 : vector<1x4x288xbf16> to vector<4x288xbf16>
    %c16_66 = arith.constant 16 : index
    %c0_67 = arith.constant 0 : index
    %59 = vector.load %arg7[%c16_66, %c0_67] : memref<40x288xbf16, #tpu.memory_space<vmem>>, vector<4x288xbf16>
    tpu.vector_store %arg7[%c16_66, %c0_67], %58 {strides = array<i32>} : memref<40x288xbf16, #tpu.memory_space<vmem>>, vector<4x288xbf16>,
    %c1_68 = arith.constant 1 : index
    %c0_69 = arith.constant 0 : index
    %c20_70 = arith.constant 20 : index
    %60 = vector.load %arg2[%c1_68, %c0_69, %c20_70] : memref<2x4x342xbf16, #tpu.memory_space<vmem>>, vector<1x4x288xbf16>
    %61 = vector.shape_cast %60 : vector<1x4x288xbf16> to vector<4x288xbf16>
    %c20_71 = arith.constant 20 : index
    %c0_72 = arith.constant 0 : index
    %62 = vector.load %arg7[%c20_71, %c0_72] : memref<40x288xbf16, #tpu.memory_space<vmem>>, vector<4x288xbf16>
    tpu.vector_store %arg7[%c20_71, %c0_72], %61 {strides = array<i32>} : memref<40x288xbf16, #tpu.memory_space<vmem>>, vector<4x288xbf16>,
    %c1_73 = arith.constant 1 : index
    %c0_74 = arith.constant 0 : index
    %c36_75 = arith.constant 36 : index
    %63 = vector.load %arg2[%c1_73, %c0_74, %c36_75] : memref<2x4x342xbf16, #tpu.memory_space<vmem>>, vector<1x4x288xbf16>
    %64 = vector.shape_cast %63 : vector<1x4x288xbf16> to vector<4x288xbf16>
    %c24_76 = arith.constant 24 : index
    %c0_77 = arith.constant 0 : index
    %65 = vector.load %arg7[%c24_76, %c0_77] : memref<40x288xbf16, #tpu.memory_space<vmem>>, vector<4x288xbf16>
    tpu.vector_store %arg7[%c24_76, %c0_77], %64 {strides = array<i32>} : memref<40x288xbf16, #tpu.memory_space<vmem>>, vector<4x288xbf16>,
    %c1_78 = arith.constant 1 : index
    %c0_79 = arith.constant 0 : index
    %c37_80 = arith.constant 37 : index
    %66 = vector.load %arg2[%c1_78, %c0_79, %c37_80] : memref<2x4x342xbf16, #tpu.memory_space<vmem>>, vector<1x4x288xbf16>
    %67 = vector.shape_cast %66 : vector<1x4x288xbf16> to vector<4x288xbf16>
    %c28_81 = arith.constant 28 : index
    %c0_82 = arith.constant 0 : index
    %68 = vector.load %arg7[%c28_81, %c0_82] : memref<40x288xbf16, #tpu.memory_space<vmem>>, vector<4x288xbf16>
    tpu.vector_store %arg7[%c28_81, %c0_82], %67 {strides = array<i32>} : memref<40x288xbf16, #tpu.memory_space<vmem>>, vector<4x288xbf16>,
    %c1_83 = arith.constant 1 : index
    %c0_84 = arith.constant 0 : index
    %c38_85 = arith.constant 38 : index
    %69 = vector.load %arg2[%c1_83, %c0_84, %c38_85] : memref<2x4x342xbf16, #tpu.memory_space<vmem>>, vector<1x4x288xbf16>
    %70 = vector.shape_cast %69 : vector<1x4x288xbf16> to vector<4x288xbf16>
    %c32_86 = arith.constant 32 : index
    %c0_87 = arith.constant 0 : index
    %71 = vector.load %arg7[%c32_86, %c0_87] : memref<40x288xbf16, #tpu.memory_space<vmem>>, vector<4x288xbf16>
    tpu.vector_store %arg7[%c32_86, %c0_87], %70 {strides = array<i32>} : memref<40x288xbf16, #tpu.memory_space<vmem>>, vector<4x288xbf16>,
    %c0_88 = arith.constant 0 : index
    %c0_89 = arith.constant 0 : index
    %72 = vector.load %arg7[%c0_88, %c0_89] : memref<40x288xbf16, #tpu.memory_space<vmem>>, vector<40x288xbf16>
    %cst_90 = arith.constant dense<0.000000e+00> : vector<16x288xf32>
    %73 = tpu.matmul %1, %72, %cst_90 {dimension_numbers = #tpu.dot_dimension_numbers<[1], [0], [0], [1], [0, 0, 1, 1], [], []>} : vector<16x40xbf16>, vector<40x288xbf16>, vector<16x288xf32> -> vector<16x288xf32>
    %74 = vector.broadcast %2 : vector<1x288xf32> to vector<16x288xf32>
    %75 = arith.mulf %73, %74 : vector<16x288xf32>
    %cst_91 = arith.constant dense<0.000000e+00> : vector<16xf32>
    %76 = vector.multi_reduction <add>, %75, %cst_91 [1] : vector<16x288xf32> to vector<16xf32>
    %77 = vector.shape_cast %76 : vector<16xf32> to vector<16x1xf32>
    %78 = arith.addf %40, %77 : vector<16x1xf32>
    %79 = arith.mulf %75, %73 : vector<16x288xf32>
    %cst_92 = arith.constant dense<0.000000e+00> : vector<16xf32>
    %80 = vector.multi_reduction <add>, %79, %cst_92 [1] : vector<16x288xf32> to vector<16xf32>
    %81 = vector.shape_cast %80 : vector<16xf32> to vector<16x1xf32>
    %82 = arith.addf %44, %81 : vector<16x1xf32>
    %83 = vector.extract_strided_slice %78 {offsets = [0, 0], sizes = [4, 1], strides = [1, 1]} : vector<16x1xf32> to vector<4x1xf32>
    %84 = vector.extract_strided_slice %78 {offsets = [4, 0], sizes = [4, 1], strides = [1, 1]} : vector<16x1xf32> to vector<4x1xf32>
    %85 = arith.addf %83, %84 : vector<4x1xf32>
    %86 = vector.extract_strided_slice %78 {offsets = [8, 0], sizes = [4, 1], strides = [1, 1]} : vector<16x1xf32> to vector<4x1xf32>
    %87 = arith.addf %85, %86 : vector<4x1xf32>
    %88 = vector.extract_strided_slice %78 {offsets = [12, 0], sizes = [4, 1], strides = [1, 1]} : vector<16x1xf32> to vector<4x1xf32>
    %89 = arith.addf %87, %88 : vector<4x1xf32>
    %90 = vector.extract_strided_slice %82 {offsets = [0, 0], sizes = [4, 1], strides = [1, 1]} : vector<16x1xf32> to vector<4x1xf32>
    %91 = vector.extract_strided_slice %82 {offsets = [4, 0], sizes = [4, 1], strides = [1, 1]} : vector<16x1xf32> to vector<4x1xf32>
    %92 = arith.addf %90, %91 : vector<4x1xf32>
    %93 = vector.extract_strided_slice %82 {offsets = [8, 0], sizes = [4, 1], strides = [1, 1]} : vector<16x1xf32> to vector<4x1xf32>
    %94 = arith.addf %92, %93 : vector<4x1xf32>
    %95 = vector.extract_strided_slice %82 {offsets = [12, 0], sizes = [4, 1], strides = [1, 1]} : vector<16x1xf32> to vector<4x1xf32>
    %96 = arith.addf %94, %95 : vector<4x1xf32>
    %cst_93 = arith.constant 4.8828125E-4 : f32
    %97 = vector.broadcast %cst_93 : f32 to vector<4x1xf32>
    %98 = arith.mulf %89, %97 : vector<4x1xf32>
    %cst_94 = arith.constant 4.8828125E-4 : f32
    %99 = vector.broadcast %cst_94 : f32 to vector<4x1xf32>
    %100 = arith.mulf %96, %99 : vector<4x1xf32>
    %101 = arith.mulf %98, %98 : vector<4x1xf32>
    %102 = arith.subf %100, %101 : vector<4x1xf32>
    %cst_95 = arith.constant 0.000000e+00 : f32
    %103 = vector.broadcast %cst_95 : f32 to vector<4x1xf32>
    %104 = arith.maximumf %102, %103 : vector<4x1xf32>
    %c0_96 = arith.constant 0 : index
    %c0_97 = arith.constant 0 : index
    %c0_98 = arith.constant 0 : index
    %105 = vector.load %arg4[%c0_96, %c0_97, %c0_98] : memref<1x4x1xf32, #tpu.memory_space<vmem>>, vector<1x4x1xf32>
    %106 = vector.shape_cast %105 : vector<1x4x1xf32> to vector<4x1xf32>
    %cst_99 = arith.constant 9.99999974E-6 : f32
    %107 = vector.broadcast %cst_99 : f32 to vector<4x1xf32>
    %108 = arith.addf %104, %107 : vector<4x1xf32>
    %109 = math.rsqrt %108 : vector<4x1xf32>
    %110 = arith.mulf %106, %109 : vector<4x1xf32>
    %c0_100 = arith.constant 0 : index
    %c0_101 = arith.constant 0 : index
    %c0_102 = arith.constant 0 : index
    %111 = vector.load %arg5[%c0_100, %c0_101, %c0_102] : memref<1x4x1xf32, #tpu.memory_space<vmem>>, vector<1x4x1xf32>
    %112 = vector.shape_cast %111 : vector<1x4x1xf32> to vector<4x1xf32>
    %113 = arith.mulf %98, %110 : vector<4x1xf32>
    %114 = arith.subf %112, %113 : vector<4x1xf32>
    %115 = vector.extract_strided_slice %35 {offsets = [0, 0], sizes = [4, 288], strides = [1, 1]} : vector<16x288xf32> to vector<4x288xf32>
    %116 = vector.broadcast %110 : vector<4x1xf32> to vector<4x288xf32>
    %117 = arith.mulf %115, %116 : vector<4x288xf32>
    %118 = vector.broadcast %114 : vector<4x1xf32> to vector<4x288xf32>
    %119 = arith.addf %117, %118 : vector<4x288xf32>
    %cst_103 = arith.constant 0.000000e+00 : f32
    %120 = vector.broadcast %cst_103 : f32 to vector<4x288xf32>
    %121 = arith.maximumf %119, %120 : vector<4x288xf32>
    %c0_104 = arith.constant 0 : index
    %c0_105 = arith.constant 0 : index
    %c0_106 = arith.constant 0 : index
    %122 = vector.load %arg6[%c0_104, %c0_105, %c0_106] : memref<2x16x288xf32, #tpu.memory_space<vmem>>, vector<1x4x288xf32>
    %123 = vector.shape_cast %122 : vector<1x4x288xf32> to vector<4x288xf32>
    %124 = vector.shape_cast %121 : vector<4x288xf32> to vector<1x4x288xf32>
    tpu.vector_store %arg6[%c0_104, %c0_105, %c0_106], %124 {strides = array<i32>} : memref<2x16x288xf32, #tpu.memory_space<vmem>>, vector<1x4x288xf32>,
    %125 = vector.extract_strided_slice %35 {offsets = [4, 0], sizes = [4, 288], strides = [1, 1]} : vector<16x288xf32> to vector<4x288xf32>
    %126 = vector.broadcast %110 : vector<4x1xf32> to vector<4x288xf32>
    %127 = arith.mulf %125, %126 : vector<4x288xf32>
    %128 = vector.broadcast %114 : vector<4x1xf32> to vector<4x288xf32>
    %129 = arith.addf %127, %128 : vector<4x288xf32>
    %cst_107 = arith.constant 0.000000e+00 : f32
    %130 = vector.broadcast %cst_107 : f32 to vector<4x288xf32>
    %131 = arith.maximumf %129, %130 : vector<4x288xf32>
    %c0_108 = arith.constant 0 : index
    %c4_109 = arith.constant 4 : index
    %c0_110 = arith.constant 0 : index
    %132 = vector.load %arg6[%c0_108, %c4_109, %c0_110] : memref<2x16x288xf32, #tpu.memory_space<vmem>>, vector<1x4x288xf32>
    %133 = vector.shape_cast %132 : vector<1x4x288xf32> to vector<4x288xf32>
    %134 = vector.shape_cast %131 : vector<4x288xf32> to vector<1x4x288xf32>
    tpu.vector_store %arg6[%c0_108, %c4_109, %c0_110], %134 {strides = array<i32>} : memref<2x16x288xf32, #tpu.memory_space<vmem>>, vector<1x4x288xf32>,
    %135 = vector.extract_strided_slice %35 {offsets = [8, 0], sizes = [4, 288], strides = [1, 1]} : vector<16x288xf32> to vector<4x288xf32>
    %136 = vector.broadcast %110 : vector<4x1xf32> to vector<4x288xf32>
    %137 = arith.mulf %135, %136 : vector<4x288xf32>
    %138 = vector.broadcast %114 : vector<4x1xf32> to vector<4x288xf32>
    %139 = arith.addf %137, %138 : vector<4x288xf32>
    %cst_111 = arith.constant 0.000000e+00 : f32
    %140 = vector.broadcast %cst_111 : f32 to vector<4x288xf32>
    %141 = arith.maximumf %139, %140 : vector<4x288xf32>
    %c0_112 = arith.constant 0 : index
    %c8_113 = arith.constant 8 : index
    %c0_114 = arith.constant 0 : index
    %142 = vector.load %arg6[%c0_112, %c8_113, %c0_114] : memref<2x16x288xf32, #tpu.memory_space<vmem>>, vector<1x4x288xf32>
    %143 = vector.shape_cast %142 : vector<1x4x288xf32> to vector<4x288xf32>
    %144 = vector.shape_cast %141 : vector<4x288xf32> to vector<1x4x288xf32>
    tpu.vector_store %arg6[%c0_112, %c8_113, %c0_114], %144 {strides = array<i32>} : memref<2x16x288xf32, #tpu.memory_space<vmem>>, vector<1x4x288xf32>,
    %145 = vector.extract_strided_slice %35 {offsets = [12, 0], sizes = [4, 288], strides = [1, 1]} : vector<16x288xf32> to vector<4x288xf32>
    %146 = vector.broadcast %110 : vector<4x1xf32> to vector<4x288xf32>
    %147 = arith.mulf %145, %146 : vector<4x288xf32>
    %148 = vector.broadcast %114 : vector<4x1xf32> to vector<4x288xf32>
    %149 = arith.addf %147, %148 : vector<4x288xf32>
    %cst_115 = arith.constant 0.000000e+00 : f32
    %150 = vector.broadcast %cst_115 : f32 to vector<4x288xf32>
    %151 = arith.maximumf %149, %150 : vector<4x288xf32>
    %c0_116 = arith.constant 0 : index
    %c12_117 = arith.constant 12 : index
    %c0_118 = arith.constant 0 : index
    %152 = vector.load %arg6[%c0_116, %c12_117, %c0_118] : memref<2x16x288xf32, #tpu.memory_space<vmem>>, vector<1x4x288xf32>
    %153 = vector.shape_cast %152 : vector<1x4x288xf32> to vector<4x288xf32>
    %154 = vector.shape_cast %151 : vector<4x288xf32> to vector<1x4x288xf32>
    tpu.vector_store %arg6[%c0_116, %c12_117, %c0_118], %154 {strides = array<i32>} : memref<2x16x288xf32, #tpu.memory_space<vmem>>, vector<1x4x288xf32>,
    %155 = vector.extract_strided_slice %73 {offsets = [0, 0], sizes = [4, 288], strides = [1, 1]} : vector<16x288xf32> to vector<4x288xf32>
    %156 = vector.broadcast %110 : vector<4x1xf32> to vector<4x288xf32>
    %157 = arith.mulf %155, %156 : vector<4x288xf32>
    %158 = vector.broadcast %114 : vector<4x1xf32> to vector<4x288xf32>
    %159 = arith.addf %157, %158 : vector<4x288xf32>
    %cst_119 = arith.constant 0.000000e+00 : f32
    %160 = vector.broadcast %cst_119 : f32 to vector<4x288xf32>
    %161 = arith.maximumf %159, %160 : vector<4x288xf32>
    %c1_120 = arith.constant 1 : index
    %c0_121 = arith.constant 0 : index
    %c0_122 = arith.constant 0 : index
    %162 = vector.load %arg6[%c1_120, %c0_121, %c0_122] : memref<2x16x288xf32, #tpu.memory_space<vmem>>, vector<1x4x288xf32>
    %163 = vector.shape_cast %162 : vector<1x4x288xf32> to vector<4x288xf32>
    %164 = vector.shape_cast %161 : vector<4x288xf32> to vector<1x4x288xf32>
    tpu.vector_store %arg6[%c1_120, %c0_121, %c0_122], %164 {strides = array<i32>} : memref<2x16x288xf32, #tpu.memory_space<vmem>>, vector<1x4x288xf32>,
    %165 = vector.extract_strided_slice %73 {offsets = [4, 0], sizes = [4, 288], strides = [1, 1]} : vector<16x288xf32> to vector<4x288xf32>
    %166 = vector.broadcast %110 : vector<4x1xf32> to vector<4x288xf32>
    %167 = arith.mulf %165, %166 : vector<4x288xf32>
    %168 = vector.broadcast %114 : vector<4x1xf32> to vector<4x288xf32>
    %169 = arith.addf %167, %168 : vector<4x288xf32>
    %cst_123 = arith.constant 0.000000e+00 : f32
    %170 = vector.broadcast %cst_123 : f32 to vector<4x288xf32>
    %171 = arith.maximumf %169, %170 : vector<4x288xf32>
    %c1_124 = arith.constant 1 : index
    %c4_125 = arith.constant 4 : index
    %c0_126 = arith.constant 0 : index
    %172 = vector.load %arg6[%c1_124, %c4_125, %c0_126] : memref<2x16x288xf32, #tpu.memory_space<vmem>>, vector<1x4x288xf32>
    %173 = vector.shape_cast %172 : vector<1x4x288xf32> to vector<4x288xf32>
    %174 = vector.shape_cast %171 : vector<4x288xf32> to vector<1x4x288xf32>
    tpu.vector_store %arg6[%c1_124, %c4_125, %c0_126], %174 {strides = array<i32>} : memref<2x16x288xf32, #tpu.memory_space<vmem>>, vector<1x4x288xf32>,
    %175 = vector.extract_strided_slice %73 {offsets = [8, 0], sizes = [4, 288], strides = [1, 1]} : vector<16x288xf32> to vector<4x288xf32>
    %176 = vector.broadcast %110 : vector<4x1xf32> to vector<4x288xf32>
    %177 = arith.mulf %175, %176 : vector<4x288xf32>
    %178 = vector.broadcast %114 : vector<4x1xf32> to vector<4x288xf32>
    %179 = arith.addf %177, %178 : vector<4x288xf32>
    %cst_127 = arith.constant 0.000000e+00 : f32
    %180 = vector.broadcast %cst_127 : f32 to vector<4x288xf32>
    %181 = arith.maximumf %179, %180 : vector<4x288xf32>
    %c1_128 = arith.constant 1 : index
    %c8_129 = arith.constant 8 : index
    %c0_130 = arith.constant 0 : index
    %182 = vector.load %arg6[%c1_128, %c8_129, %c0_130] : memref<2x16x288xf32, #tpu.memory_space<vmem>>, vector<1x4x288xf32>
    %183 = vector.shape_cast %182 : vector<1x4x288xf32> to vector<4x288xf32>
    %184 = vector.shape_cast %181 : vector<4x288xf32> to vector<1x4x288xf32>
    tpu.vector_store %arg6[%c1_128, %c8_129, %c0_130], %184 {strides = array<i32>} : memref<2x16x288xf32, #tpu.memory_space<vmem>>, vector<1x4x288xf32>,
    %185 = vector.extract_strided_slice %73 {offsets = [12, 0], sizes = [4, 288], strides = [1, 1]} : vector<16x288xf32> to vector<4x288xf32>
    %186 = vector.broadcast %110 : vector<4x1xf32> to vector<4x288xf32>
    %187 = arith.mulf %185, %186 : vector<4x288xf32>
    %188 = vector.broadcast %114 : vector<4x1xf32> to vector<4x288xf32>
    %189 = arith.addf %187, %188 : vector<4x288xf32>
    %cst_131 = arith.constant 0.000000e+00 : f32
    %190 = vector.broadcast %cst_131 : f32 to vector<4x288xf32>
    %191 = arith.maximumf %189, %190 : vector<4x288xf32>
    %c1_132 = arith.constant 1 : index
    %c12_133 = arith.constant 12 : index
    %c0_134 = arith.constant 0 : index
    %192 = vector.load %arg6[%c1_132, %c12_133, %c0_134] : memref<2x16x288xf32, #tpu.memory_space<vmem>>, vector<1x4x288xf32>
    %193 = vector.shape_cast %192 : vector<1x4x288xf32> to vector<4x288xf32>
    %194 = vector.shape_cast %191 : vector<4x288xf32> to vector<1x4x288xf32>
    tpu.vector_store %arg6[%c1_132, %c12_133, %c0_134], %194 {strides = array<i32>} : memref<2x16x288xf32, #tpu.memory_space<vmem>>, vector<1x4x288xf32>,
    return
  }
  func.func @transform_0(%arg0: i32) -> (i32, i32, i32) {
    %c0_i32 = arith.constant 0 : i32
    %c0_i32_0 = arith.constant 0 : i32
    %c0_i32_1 = arith.constant 0 : i32
    return %arg0, %c0_i32, %c0_i32_0 : i32, i32, i32
  }
  func.func @transform_1(%arg0: i32) -> (i32, i32, i32) {
    %c0_i32 = arith.constant 0 : i32
    %c0_i32_0 = arith.constant 0 : i32
    %c0_i32_1 = arith.constant 0 : i32
    %c0_i32_2 = arith.constant 0 : i32
    return %c0_i32, %c0_i32_0, %c0_i32_1 : i32, i32, i32
  }
  func.func @transform_2(%arg0: i32) -> (i32, i32) {
    %c0_i32 = arith.constant 0 : i32
    %c0_i32_0 = arith.constant 0 : i32
    %c0_i32_1 = arith.constant 0 : i32
    return %c0_i32, %c0_i32_0 : i32, i32
  }
  func.func @transform_3(%arg0: i32) -> (i32, i32, i32) {
    %c0_i32 = arith.constant 0 : i32
    %c0_i32_0 = arith.constant 0 : i32
    %c0_i32_1 = arith.constant 0 : i32
    return %arg0, %c0_i32, %c0_i32_0 : i32, i32, i32
  }
  func.func @transform_4(%arg0: i32) -> (i32, i32, i32) {
    %c0_i32 = arith.constant 0 : i32
    %c0_i32_0 = arith.constant 0 : i32
    %c0_i32_1 = arith.constant 0 : i32
    return %arg0, %c0_i32, %c0_i32_0 : i32, i32, i32
  }
  func.func @transform_5(%arg0: i32) -> (i32, i32, i32) {
    %c0_i32 = arith.constant 0 : i32
    %c0_i32_0 = arith.constant 0 : i32
    %c0_i32_1 = arith.constant 0 : i32
    return %c0_i32, %arg0, %c0_i32_0 : i32, i32, i32
  }
}

</mosaic_0001>

<llo_original>
// kernel: g_block_forward.1
$region0: #{g_block_forward.1}
  #allocation0 [shape = 'u32[]', space=smem, size = 0x4, offset = 0x4, fixed_abs, tag = 'smem constant byte address 0x4 - core index']
  #allocation1 [shape = 'u32[144,128]{1,0:T(1,128)}', space=vmem, size = 0x12000, scoped, tag = 'internal scratch']
  #allocation2 [shape = 'bf16[40,288]{1,0:T(8,128)(2,1)}', space=vmem, size = 0x7800, scoped, tag = 'scratch operand']
  %s0 = inlined_call_operand.vmem [shape: bf16[2,16,40], index: 0, kind: input, shape index: {}]
  %s1 = inlined_call_operand.vmem [shape: bf16[2,4,342], index: 1, kind: input, shape index: {}]
  %s2 = inlined_call_operand.hbm [shape: f32[1,288], index: 2, kind: input, shape index: {}]
  %s3 = inlined_call_operand.vmem [shape: f32[2,4,1], index: 3, kind: input, shape index: {}]
  %s4 = inlined_call_operand.vmem [shape: f32[2,4,1], index: 4, kind: input, shape index: {}]
  %s5 = inlined_call_operand.vmem [shape: f32[2,32,288], index: 5, kind: output, shape index: {}]
  %s6 = sld [smem:[#allocation0]]
  $region76: #{g_block_forward.1} parent=0
    _
  %s8 = ssub.s32 1, %s6
  %s9 = scalar_select 0, %s8, %s6
  $region1: #{g_block_forward.1} parent=0
    #allocation3 [shape = 'u8[1536]{0}', space=vmem, size = 0x800, scoped, tag = 'input window, operand 2, single buffered']
    #allocation4 [shape = 's32[2]{0}', space=sflag, size = 0x8, scoped, tag = 'scoped memory for g_block_forward.1']
    #allocation5 [shape = 'u8[98304]{0}', space=vmem, size = 0x18000, scoped, tag = 'output window, operand 0']
    %10 = vsyncpa [#allocation4], 0
    loop: start=0, step=1, limit=4
    $region2: #{g_block_forward.1} parent=1 // loop_pre_header
      _
    $region3: #{g_block_forward.1} parent=1 // loop_header
      %s12 = sphi 0, %s16
      %p13 = scmp.ge.s32.totalorder %s12, 4
      %s22 = sphi 0, %s24
      %s25 = sphi 0, %s22
      %s26 = sphi 0, %s25
      %s42 = sphi 0, %s26
      %s46 = sphi 0, %s46
      %s48 = sphi 0, %s46
      %s49 = sphi 0, %s48
      %s63 = sphi 0, %s49
      %s67 = sphi 0, %s67
      %s69 = sphi 0, %s67
      %s70 = sphi 0, %s69
      %s84 = sphi 0, %s70
      %s90 = sphi 0, %s92
      %s93 = sphi 0, %s90
      %s94 = sphi 0, %s93
      %s110 = sphi 0, %s94
      %s116 = sphi 0, %s118
      %s119 = sphi 0, %s116
      %s120 = sphi 0, %s119
      %s136 = sphi 0, %s120
      %s142 = sphi 0, %s144
      %s145 = sphi 0, %s142
      %s146 = sphi 0, %s145
      %s162 = sphi 0, %s146
    $region4: #{g_block_forward.1} parent=1 // loop_header_branch
      %15 = sbr.rel (%p13) target = $region8
    $region5: #{g_block_forward.1} parent=1 // loop_body
      %s17 = ssub.s32 %s12, 1
      %s18 = ssub.s32 %s12, 2
      %s19 = sadd.s32 %s12, 1
      %s20 = ssub.s32 %s12, %s19
      %p21 = scmp.eq.s32.totalorder %s20, 0
      %s23 = sadd.s32 %s22, 1
      %s24 = scalar_select %p21, %s22, %s23
      %p27 = pneg %p21
      %p28 = scmp.eq.s32.totalorder %s12, 1
      %p29 = por %p27, %p28
      %p30 = scmp.ne.s32.totalorder %s22, %s25
      %p31 = scmp.eq.s32.totalorder %s12, 0
      %p32 = por %p30, %p31
      %p33 = scmp.ne.s32.totalorder %s22, %s25
      %p34 = scmp.eq.s32.totalorder %s17, 1
      %p35 = por %p33, %p34
      %p36 = scmp.ne.s32.totalorder %s25, %s26
      %p37 = scmp.eq.s32.totalorder %s17, 0
      %p38 = por %p36, %p37
      %p39 = scmp.ne.s32.totalorder %s25, %s26
      %p40 = scmp.eq.s32.totalorder %s18, 1
      %p41 = por %p39, %p40
      %p43 = scmp.ne.s32.totalorder %s26, %s42
      %p44 = scmp.eq.s32.totalorder %s18, 0
      %p45 = por %p43, %p44
      %s47 = sadd.s32 %s46, 1
      %p50 = scmp.eq.s32.totalorder %s12, 1
      %p51 = scmp.ne.s32.totalorder %s46, %s48
      %p52 = scmp.eq.s32.totalorder %s12, 0
      %p53 = por %p51, %p52
      %p54 = scmp.ne.s32.totalorder %s46, %s48
      %p55 = scmp.eq.s32.totalorder %s17, 1
      %p56 = por %p54, %p55
      %p57 = scmp.ne.s32.totalorder %s48, %s49
      %p58 = scmp.eq.s32.totalorder %s17, 0
      %p59 = por %p57, %p58
      %p60 = scmp.ne.s32.totalorder %s48, %s49
      %p61 = scmp.eq.s32.totalorder %s18, 1
      %p62 = por %p60, %p61
      %p64 = scmp.ne.s32.totalorder %s49, %s63
      %p65 = scmp.eq.s32.totalorder %s18, 0
      %p66 = por %p64, %p65
      %s68 = sadd.s32 %s67, 1
      %p71 = scmp.eq.s32.totalorder %s12, 1
      %p72 = scmp.ne.s32.totalorder %s67, %s69
      %p73 = scmp.eq.s32.totalorder %s12, 0
      %p74 = por %p72, %p73
      %p75 = scmp.ne.s32.totalorder %s67, %s69
      %p76 = scmp.eq.s32.totalorder %s17, 1
      %p77 = por %p75, %p76
      %p78 = scmp.ne.s32.totalorder %s69, %s70
      %p79 = scmp.eq.s32.totalorder %s17, 0
      %p80 = por %p78, %p79
      %p81 = scmp.ne.s32.totalorder %s69, %s70
      %p82 = scmp.eq.s32.totalorder %s18, 1
      %p83 = por %p81, %p82
      %p85 = scmp.ne.s32.totalorder %s70, %s84
      %p86 = scmp.eq.s32.totalorder %s18, 0
      %p87 = por %p85, %p86
      %s88 = ssub.s32 %s12, %s19
      %p89 = scmp.eq.s32.totalorder %s88, 0
      %s91 = sadd.s32 %s90, 1
      %s92 = scalar_select %p89, %s90, %s91
      %p95 = pneg %p89
      %p96 = scmp.eq.s32.totalorder %s12, 1
      %p97 = por %p95, %p96
      %p98 = scmp.ne.s32.totalorder %s90, %s93
      %p99 = scmp.eq.s32.totalorder %s12, 0
      %p100 = por %p98, %p99
      %p101 = scmp.ne.s32.totalorder %s90, %s93
      %p102 = scmp.eq.s32.totalorder %s17, 1
      %p103 = por %p101, %p102
      %p104 = scmp.ne.s32.totalorder %s93, %s94
      %p105 = scmp.eq.s32.totalorder %s17, 0
      %p106 = por %p104, %p105
      %p107 = scmp.ne.s32.totalorder %s93, %s94
      %p108 = scmp.eq.s32.totalorder %s18, 1
      %p109 = por %p107, %p108
      %p111 = scmp.ne.s32.totalorder %s94, %s110
      %p112 = scmp.eq.s32.totalorder %s18, 0
      %p113 = por %p111, %p112
      %s114 = ssub.s32 %s12, %s19
      %p115 = scmp.eq.s32.totalorder %s114, 0
      %s117 = sadd.s32 %s116, 1
      %s118 = scalar_select %p115, %s116, %s117
      %p121 = pneg %p115
      %p122 = scmp.eq.s32.totalorder %s12, 1
      %p123 = por %p121, %p122
      %p124 = scmp.ne.s32.totalorder %s116, %s119
      %p125 = scmp.eq.s32.totalorder %s12, 0
      %p126 = por %p124, %p125
      %p127 = scmp.ne.s32.totalorder %s116, %s119
      %p128 = scmp.eq.s32.totalorder %s17, 1
      %p129 = por %p127, %p128
      %p130 = scmp.ne.s32.totalorder %s119, %s120
      %p131 = scmp.eq.s32.totalorder %s17, 0
      %p132 = por %p130, %p131
      %p133 = scmp.ne.s32.totalorder %s119, %s120
      %p134 = scmp.eq.s32.totalorder %s18, 1
      %p135 = por %p133, %p134
      %p137 = scmp.ne.s32.totalorder %s120, %s136
      %p138 = scmp.eq.s32.totalorder %s18, 0
      %p139 = por %p137, %p138
      %s140 = ssub.s32 %s12, %s19
      %p141 = scmp.eq.s32.totalorder %s140, 0
      %s143 = sadd.s32 %s142, 1
      %s144 = scalar_select %p141, %s142, %s143
      %p147 = pneg %p141
      %p148 = scmp.eq.s32.totalorder %s12, 1
      %p149 = por %p147, %p148
      %p150 = scmp.ne.s32.totalorder %s142, %s145
      %p151 = scmp.eq.s32.totalorder %s12, 0
      %p152 = por %p150, %p151
      %p153 = scmp.ne.s32.totalorder %s142, %s145
      %p154 = scmp.eq.s32.totalorder %s17, 1
      %p155 = por %p153, %p154
      %p156 = scmp.ne.s32.totalorder %s145, %s146
      %p157 = scmp.eq.s32.totalorder %s17, 0
      %p158 = por %p156, %p157
      %p159 = scmp.ne.s32.totalorder %s145, %s146
      %p160 = scmp.eq.s32.totalorder %s18, 1
      %p161 = por %p159, %p160
      %p163 = scmp.ne.s32.totalorder %s146, %s162
      %p164 = scmp.eq.s32.totalorder %s18, 0
      %p165 = por %p163, %p164
      %p166 = scmp.le.s32.totalorder 1, %s12
      %p167 = scmp.lt.s32.totalorder %s12, 3
      %p168 = pnand %p166, %p167
      %p169 = pneg %p168
      // Predicated region
      $region9: #{g_block_forward.1} parent=5 // pred_check
        _
      $region10: #{g_block_forward.1} parent=5 // pred_check_branch
        %171 = sbr.rel (%p168) target = $region12
      $region11: #{g_block_forward.1} parent=5 // pred_region
        %s172 = ssub.s32 %s12, 1
        // Predicated region
        $region13: #{g_block_forward.1} parent=11 // pred_check
          %p173 = pneg %p59
        $region14: #{g_block_forward.1} parent=11 // pred_check_branch
          %175 = sbr.rel (%p173) target = $region16
        $region15: #{g_block_forward.1} parent=11 // pred_region
          _
        $region16: #{g_block_forward.1} parent=11 // pred_fallthru
          _
        // Predicated region
        $region17: #{g_block_forward.1} parent=11 // pred_check
          %p176 = pneg %p80
        $region18: #{g_block_forward.1} parent=11 // pred_check_branch
          %178 = sbr.rel (%p176) target = $region20
        $region19: #{g_block_forward.1} parent=11 // pred_region
          %s180 = ssub.s32 48, 48
          %181 = vsyncadd [#allocation4], %s180
          %s183 = sshll.u32 [#allocation3], 4
          %s184 = int_to_ptr.vmem [resolvable:$true] %s183
          %186 = dma.hbm_to_vmem [thread:$0]  %s2, 48, %s184, [#allocation4]
        $region20: #{g_block_forward.1} parent=11 // pred_fallthru
          _
      $region12: #{g_block_forward.1} parent=5 // pred_fallthru
        _
      %p187 = scmp.lt.s32.totalorder %s12, 2
      // Predicated region
      $region21: #{g_block_forward.1} parent=5 // pred_check
        %p188 = pneg %p187
      $region22: #{g_block_forward.1} parent=5 // pred_check_branch
        %190 = sbr.rel (%p188) target = $region24
      $region23: #{g_block_forward.1} parent=5 // pred_region
        // Predicated region
        $region25: #{g_block_forward.1} parent=23 // pred_check
          %p191 = pneg %p32
        $region26: #{g_block_forward.1} parent=23 // pred_check_branch
          %193 = sbr.rel (%p191) target = $region28
        $region27: #{g_block_forward.1} parent=23 // pred_region
          %p194 = scmp.lt.s32.totalorder %s12, 1
          %s195 = scalar_select %p194, %s12, 1
          %s196 = smul.addr %s195, 2
          %s197 = smul.addr %s196, 4
          %s198 = scalar_lea.vmem %s0, %s197
        $region28: #{g_block_forward.1} parent=23 // pred_fallthru
          _
        // Predicated region
        $region29: #{g_block_forward.1} parent=23 // pred_check
          %p199 = pneg %p100
        $region30: #{g_block_forward.1} parent=23 // pred_check_branch
          %201 = sbr.rel (%p199) target = $region32
        $region31: #{g_block_forward.1} parent=23 // pred_region
          %p202 = scmp.lt.s32.totalorder %s12, 1
          %s203 = scalar_select %p202, %s12, 1
          %s204 = smul.addr %s203, 4
          %s205 = scalar_lea.vmem %s3, %s204
        $region32: #{g_block_forward.1} parent=23 // pred_fallthru
          _
        // Predicated region
        $region33: #{g_block_forward.1} parent=23 // pred_check
          %p206 = pneg %p126
        $region34: #{g_block_forward.1} parent=23 // pred_check_branch
          %208 = sbr.rel (%p206) target = $region36
        $region35: #{g_block_forward.1} parent=23 // pred_region
          %p209 = scmp.lt.s32.totalorder %s12, 1
          %s210 = scalar_select %p209, %s12, 1
          %s211 = smul.addr %s210, 4
          %s212 = scalar_lea.vmem %s4, %s211
        $region36: #{g_block_forward.1} parent=23 // pred_fallthru
          _
      $region24: #{g_block_forward.1} parent=5 // pred_fallthru
        _
      %p213 = scmp.le.s32.totalorder 1, %s12
      %p214 = scmp.lt.s32.totalorder %s12, 3
      %p215 = pnand %p213, %p214
      %p216 = pneg %p215
      // Predicated region
      $region37: #{g_block_forward.1} parent=5 // pred_check
        _
      $region38: #{g_block_forward.1} parent=5 // pred_check_branch
        %218 = sbr.rel (%p215) target = $region40
      $region39: #{g_block_forward.1} parent=5 // pred_region
        %s219 = ssub.s32 %s12, 1
        // Predicated region
        $region41: #{g_block_forward.1} parent=39 // pred_check
          %p220 = pneg %p80
        $region42: #{g_block_forward.1} parent=39 // pred_check_branch
          %222 = sbr.rel (%p220) target = $region44
        $region43: #{g_block_forward.1} parent=39 // pred_region
          %223 = dma.done [#allocation4], 48
        $region44: #{g_block_forward.1} parent=39 // pred_fallthru
          _
        %p224 = scmp.lt.s32.totalorder %s17, 1
        %s225 = scalar_select %p224, %s17, 1
        %s226 = smul.addr %s225, 2
        %s227 = smul.addr %s226, 4
        %s228 = scalar_lea.vmem %s0, %s227
        %p229 = pneg %p38
        %p230 = pneg %p35
        %p231 = pneg %p59
        %p232 = pneg %p56
        %p233 = pneg %p80
        %p234 = pneg %p77
        %p235 = scmp.lt.s32.totalorder %s17, 1
        %s236 = scalar_select %p235, %s17, 1
        %s237 = smul.addr %s236, 4
        %s238 = scalar_lea.vmem %s3, %s237
        %p239 = pneg %p106
        %p240 = pneg %p103
        %p241 = scmp.lt.s32.totalorder %s17, 1
        %s242 = scalar_select %p241, %s17, 1
        %s243 = smul.addr %s242, 4
        %s244 = scalar_lea.vmem %s4, %s243
        %p245 = pneg %p132
        %p246 = pneg %p129
        %p247 = pneg %p158
        %p248 = pneg %p155
        %s249 = sand.u32 %s145, 1
        %s250 = sand.u32 %s145, 1
        %s251 = smul.addr %s250, 96
        %s252 = scalar_lea.vmem [#allocation5], %s251
        %p253 = scmp.lt.s32.totalorder %s17, 1
        %s254 = scalar_select %p253, %s17, 1
        %s255 = smul.addr %s254, 2
        %s256 = smul.addr %s255, 4
        %s257 = scalar_lea.vmem %s0, %s256
        %p258 = scmp.lt.s32.totalorder %s17, 1
        %s259 = scalar_select %p258, %s17, 1
        %s260 = smul.addr %s259, 4
        %s261 = scalar_lea.vmem %s3, %s260
        %p262 = scmp.lt.s32.totalorder %s17, 1
        %s263 = scalar_select %p262, %s17, 1
        %s264 = smul.addr %s263, 4
        %s265 = scalar_lea.vmem %s4, %s264
        %s266 = smul.u32 2, %s17
        %v268 = vld [vmem:[%s257] sm:$0xf]
        %v269 = vld [vmem:[%s257 + $0x4] sm:$0xf]
        %v270 = vld [vmem:[#allocation3] sm:$0x7]
        %271 = vst [vmem:[#allocation2 + $0x30] sm:$0xcc] 0
        %vm272 = vcmask 257026
        %273 = vst.msk [vmem:[#allocation2 + $0x38] sm:$0xc] %vm272, 0
        %v274 = vld [vmem:[%s1] sm:$0x3f]
        %v276 = vcombine.high %v274, %v274
        %v278 = vunpack.c.l.s4 1983009808
        %v279 = vunpack.c.0.s8 %v278
        %v280 = vlaneseq
        %v281 = vshrl.u32 %v280, 7
        %v282 = vsub.s32 %v279, %v281
        %v283 = vrot.slane %v274, %v282
        %v285 = vunpack.c.l.s4 1983009808
        %v286 = vunpack.c.0.s8 %v285
        %v287 = vlaneseq
        %v288 = vshrl.u32 %v287, 7
        %v289 = vsub.s32 %v286, %v288
        %v290 = vrot.slane %v276, %v289
        %293 = vst [vmem:[#allocation2] sm:$0x33] %v283
        %vm294 = vcmask 254976
        %295 = vst.msk [vmem:[#allocation2 + $0x8] sm:$0x3] %vm294, %v290
        %v296 = vld [vmem:[%s1] sm:$0x3f]
        %v298 = vcombine.low %v296, %v296
        %v300 = vunpack.c.l.s4 1983009808
        %v301 = vunpack.c.0.s8 %v300
        %v302 = vlaneseq
        %v303 = vshrl.u32 %v302, 7
        %v304 = vsub.s32 %v301, %v303
        %v305 = vrot.slane %v298, %v304
        %v307 = vunpack.c.l.s4 1983009808
        %v308 = vunpack.c.0.s8 %v307
        %v309 = vlaneseq
        %v310 = vshrl.u32 %v309, 7
        %v311 = vsub.s32 %v308, %v310
        %v312 = vrot.slane %v296, %v311
        %313 = vrot.lane.b32.xlu0 %v305, 127
        %v314 = vpop.permute.xlu0 %313
        %315 = vrot.lane.b32.xlu0 %v312, 127
        %v316 = vpop.permute.xlu0 %315
        %v317 = vrot.slane %v314, 4
        %v318 = vrot.slane %v316, 4
        %vm319 = vcmask 1043456
        %v320 = vsel %vm319, %v317, %v318
        %vm321 = vcmask 1039360
        %v322 = vsel %vm321, %v314, %v320
        %325 = vst [vmem:[#allocation2] sm:$0xcc] %v322
        %326 = vst.msk [vmem:[#allocation2 + $0x8] sm:$0xc] %vm272, %v316
        %v327 = vld [vmem:[%s1] sm:$0x3f]
        %v329 = vcombine.high %v327, %v327
        %v331 = vunpack.c.l.s4 1983009808
        %v332 = vunpack.c.0.s8 %v331
        %v333 = vlaneseq
        %v334 = vshrl.u32 %v333, 7
        %v335 = vsub.s32 %v332, %v334
        %v336 = vrot.slane %v327, %v335
        %v338 = vunpack.c.l.s4 1983009808
        %v339 = vunpack.c.0.s8 %v338
        %v340 = vlaneseq
        %v341 = vshrl.u32 %v340, 7
        %v342 = vsub.s32 %v339, %v341
        %v343 = vrot.slane %v329, %v342
        %344 = vrot.lane.b32.xlu0 %v336, 126
        %v345 = vpop.permute.xlu0 %344
        %346 = vrot.lane.b32.xlu0 %v343, 126
        %v347 = vpop.permute.xlu0 %346
        %v348 = vrot.slane %v345, 4
        %v349 = vrot.slane %v347, 4
        %v350 = vsel %vm319, %v348, %v349
        %vm351 = vcmask 1031168
        %v352 = vsel %vm351, %v345, %v350
        %355 = vst [vmem:[#allocation2 + $0xc] sm:$0x33] %v352
        %356 = vst.msk [vmem:[#allocation2 + $0x14] sm:$0x3] %vm294, %v347
        %v357 = vld [vmem:[%s1] sm:$0x3f]
        %v359 = vcombine.low %v357, %v357
        %v361 = vunpack.c.l.s4 1983009808
        %v362 = vunpack.c.0.s8 %v361
        %v363 = vlaneseq
        %v364 = vshrl.u32 %v363, 7
        %v365 = vsub.s32 %v362, %v364
        %v366 = vrot.slane %v359, %v365
        %v368 = vunpack.c.l.s4 1983009808
        %v369 = vunpack.c.0.s8 %v368
        %v370 = vlaneseq
        %v371 = vshrl.u32 %v370, 7
        %v372 = vsub.s32 %v369, %v371
        %v373 = vrot.slane %v357, %v372
        %374 = vrot.lane.b32.xlu0 %v366, 110
        %v375 = vpop.permute.xlu0 %374
        %376 = vrot.lane.b32.xlu0 %v373, 110
        %v377 = vpop.permute.xlu0 %376
        %v378 = vrot.slane %v375, 4
        %v379 = vrot.slane %v377, 4
        %v380 = vsel %vm319, %v378, %v379
        %vm381 = vcmask 900096
        %v382 = vsel %vm381, %v375, %v380
        %385 = vst [vmem:[#allocation2 + $0xc] sm:$0xcc] %v382
        %386 = vst.msk [vmem:[#allocation2 + $0x14] sm:$0xc] %vm272, %v377
        %v387 = vld [vmem:[%s1] sm:$0x3f]
        %v389 = vcombine.high %v387, %v387
        %v391 = vunpack.c.l.s4 1983009808
        %v392 = vunpack.c.0.s8 %v391
        %v393 = vlaneseq
        %v394 = vshrl.u32 %v393, 7
        %v395 = vsub.s32 %v392, %v394
        %v396 = vrot.slane %v387, %v395
        %v398 = vunpack.c.l.s4 1983009808
        %v399 = vunpack.c.0.s8 %v398
        %v400 = vlaneseq
        %v401 = vshrl.u32 %v400, 7
        %v402 = vsub.s32 %v399, %v401
        %v403 = vrot.slane %v389, %v402
        %404 = vrot.lane.b32.xlu0 %v396, 109
        %v405 = vpop.permute.xlu0 %404
        %406 = vrot.lane.b32.xlu0 %v403, 109
        %v407 = vpop.permute.xlu0 %406
        %v408 = vrot.slane %v405, 4
        %v409 = vrot.slane %v407, 4
        %v410 = vsel %vm319, %v408, %v409
        %vm411 = vcmask 891904
        %v412 = vsel %vm411, %v405, %v410
        %415 = vst [vmem:[#allocation2 + $0x18] sm:$0x33] %v412
        %416 = vst.msk [vmem:[#allocation2 + $0x20] sm:$0x3] %vm294, %v407
        %v417 = vld [vmem:[%s1] sm:$0x3f]
        %v419 = vcombine.low %v417, %v417
        %v421 = vunpack.c.l.s4 1983009808
        %v422 = vunpack.c.0.s8 %v421
        %v423 = vlaneseq
        %v424 = vshrl.u32 %v423, 7
        %v425 = vsub.s32 %v422, %v424
        %v426 = vrot.slane %v419, %v425
        %v428 = vunpack.c.l.s4 1983009808
        %v429 = vunpack.c.0.s8 %v428
        %v430 = vlaneseq
        %v431 = vshrl.u32 %v430, 7
        %v432 = vsub.s32 %v429, %v431
        %v433 = vrot.slane %v417, %v432
        %434 = vrot.lane.b32.xlu0 %v426, 108
        %v435 = vpop.permute.xlu0 %434
        %436 = vrot.lane.b32.xlu0 %v433, 108
        %v437 = vpop.permute.xlu0 %436
        %v438 = vrot.slane %v435, 4
        %v439 = vrot.slane %v437, 4
        %v440 = vsel %vm319, %v438, %v439
        %vm441 = vcmask 883712
        %v442 = vsel %vm441, %v435, %v440
        %445 = vst [vmem:[#allocation2 + $0x18] sm:$0xcc] %v442
        %446 = vst.msk [vmem:[#allocation2 + $0x20] sm:$0xc] %vm272, %v437
        %v447 = vld [vmem:[%s1] sm:$0x3f]
        %v449 = vcombine.high %v447, %v447
        %v451 = vunpack.c.l.s4 1983009808
        %v452 = vunpack.c.0.s8 %v451
        %v453 = vlaneseq
        %v454 = vshrl.u32 %v453, 7
        %v455 = vsub.s32 %v452, %v454
        %v456 = vrot.slane %v447, %v455
        %v458 = vunpack.c.l.s4 1983009808
        %v459 = vunpack.c.0.s8 %v458
        %v460 = vlaneseq
        %v461 = vshrl.u32 %v460, 7
        %v462 = vsub.s32 %v459, %v461
        %v463 = vrot.slane %v449, %v462
        %464 = vrot.lane.b32.xlu0 %v456, 92
        %v465 = vpop.permute.xlu0 %464
        %466 = vrot.lane.b32.xlu0 %v463, 92
        %v467 = vpop.permute.xlu0 %466
        %v468 = vrot.slane %v465, 4
        %v469 = vrot.slane %v467, 4
        %v470 = vsel %vm319, %v468, %v469
        %vm471 = vcmask 752640
        %v472 = vsel %vm471, %v465, %v470
        %475 = vst [vmem:[#allocation2 + $0x24] sm:$0x33] %v472
        %476 = vst.msk [vmem:[#allocation2 + $0x2c] sm:$0x3] %vm294, %v467
        %v477 = vld [vmem:[%s1] sm:$0x3f]
        %v479 = vcombine.low %v477, %v477
        %v481 = vunpack.c.l.s4 1983009808
        %v482 = vunpack.c.0.s8 %v481
        %v483 = vlaneseq
        %v484 = vshrl.u32 %v483, 7
        %v485 = vsub.s32 %v482, %v484
        %v486 = vrot.slane %v479, %v485
        %v488 = vunpack.c.l.s4 1983009808
        %v489 = vunpack.c.0.s8 %v488
        %v490 = vlaneseq
        %v491 = vshrl.u32 %v490, 7
        %v492 = vsub.s32 %v489, %v491
        %v493 = vrot.slane %v477, %v492
        %494 = vrot.lane.b32.xlu0 %v486, 91
        %v495 = vpop.permute.xlu0 %494
        %496 = vrot.lane.b32.xlu0 %v493, 91
        %v497 = vpop.permute.xlu0 %496
        %v498 = vrot.slane %v495, 4
        %v499 = vrot.slane %v497, 4
        %v500 = vsel %vm319, %v498, %v499
        %vm501 = vcmask 744448
        %v502 = vsel %vm501, %v495, %v500
        %505 = vst [vmem:[#allocation2 + $0x24] sm:$0xcc] %v502
        %506 = vst.msk [vmem:[#allocation2 + $0x2c] sm:$0xc] %vm272, %v497
        %v507 = vld [vmem:[%s1] sm:$0x3f]
        %v509 = vcombine.high %v507, %v507
        %v511 = vunpack.c.l.s4 1983009808
        %v512 = vunpack.c.0.s8 %v511
        %v513 = vlaneseq
        %v514 = vshrl.u32 %v513, 7
        %v515 = vsub.s32 %v512, %v514
        %v516 = vrot.slane %v507, %v515
        %v518 = vunpack.c.l.s4 1983009808
        %v519 = vunpack.c.0.s8 %v518
        %v520 = vlaneseq
        %v521 = vshrl.u32 %v520, 7
        %v522 = vsub.s32 %v519, %v521
        %v523 = vrot.slane %v509, %v522
        %524 = vrot.lane.b32.xlu0 %v516, 90
        %v525 = vpop.permute.xlu0 %524
        %526 = vrot.lane.b32.xlu0 %v523, 90
        %v527 = vpop.permute.xlu0 %526
        %v528 = vrot.slane %v525, 4
        %v529 = vrot.slane %v527, 4
        %v530 = vsel %vm319, %v528, %v529
        %vm531 = vcmask 736256
        %v532 = vsel %vm531, %v525, %v530
        %535 = vst [vmem:[#allocation2 + $0x30] sm:$0x33] %v532
        %536 = vst.msk [vmem:[#allocation2 + $0x38] sm:$0x3] %vm294, %v527
        %v537 = vld [vmem:[#allocation2] sm:$0xff]
        %v538 = vld [vmem:[#allocation2 + $0x8] sm:$0xf]
        %v539 = vld [vmem:[#allocation2 + $0xc] sm:$0xff]
        %v540 = vld [vmem:[#allocation2 + $0x14] sm:$0xf]
        %v541 = vld [vmem:[#allocation2 + $0x18] sm:$0xff]
        %v542 = vld [vmem:[#allocation2 + $0x20] sm:$0xf]
        %v543 = vld [vmem:[#allocation2 + $0x24] sm:$0xff]
        %v544 = vld [vmem:[#allocation2 + $0x2c] sm:$0xf]
        %v545 = vld [vmem:[#allocation2 + $0x30] sm:$0xff]
        %v546 = vld [vmem:[#allocation2 + $0x38] sm:$0xf]
        %v549 = vunpack.c.l.b16 %v268
        %v550 = vunpack.c.l.b16 %v269
        %v551 = vpack.c.b16 %v550, %v549
        %v562 = vunpack.c.l.b16 %v537
        %v563 = vunpack.c.h.b16 %v537
        %v564 = vunpack.c.l.b16 %v538
        %v565 = vunpack.c.l.b16 %v539
        %v566 = vunpack.c.h.b16 %v539
        %v567 = vunpack.c.l.b16 %v540
        %v568 = vunpack.c.l.b16 %v541
        %v569 = vunpack.c.h.b16 %v541
        %v570 = vunpack.c.l.b16 %v542
        %v571 = vunpack.c.l.b16 %v543
        %v572 = vunpack.c.h.b16 %v543
        %v573 = vunpack.c.l.b16 %v544
        %v574 = vunpack.c.l.b16 %v545
        %v575 = vunpack.c.h.b16 %v545
        %v576 = vunpack.c.l.b16 %v546
        %v577 = vpack.c.b16 %v565, %v562
        %v578 = vpack.c.b16 %v566, %v563
        %v579 = vpack.c.b16 %v567, %v564
        %v580 = vpack.c.b16 %v571, %v568
        %v581 = vpack.c.b16 %v572, %v569
        %v582 = vpack.c.b16 %v573, %v570
        %v583 = vpack.c.b16 %v574, %v574
        %v584 = vpack.c.b16 %v575, %v575
        %v585 = vpack.c.b16 %v576, %v576
        %vm592 = vcmask 326656
        %v594 = vsel %vm592, %v551, 0
        %vm596 = vcmask 1043456
        %v598 = vsel %vm596, %v583, 0
        %v601 = vsel %vm596, %v584, 0
        %v604 = vsel %vm596, %v585, 0
        %606 = vmatprep.subr.bf16.mxu0 0
        %607 = vmatpush1.bf16.msra.mxu0 0
        %608 = vmatprep.subr.bf16.mxu0 0
        %609 = vmatpush1.bf16.msra.mxu0 0
        %610 = vmatprep.subr.bf16.mxu0 0
        %611 = vmatpush1.bf16.msra.mxu0 0
        %612 = vmatprep.subr.bf16.mxu0 0
        %613 = vmatpush1.bf16.msra.mxu0 0
        %614 = vmatprep.subr.bf16.mxu0 0
        %615 = vmatpush1.bf16.msra.mxu0 0
        %616 = vmatprep.subr.bf16.mxu0 %v601
        %617 = vmatpush1.bf16.msra.mxu0 %v598
        %618 = vmatprep.subr.bf16.mxu0 %v581
        %619 = vmatpush1.bf16.msra.mxu0 %v580
        %620 = vmatprep.subr.bf16.mxu0 %v578
        %621 = vmatpush1.bf16.msra.mxu0 %v577
        %622 = vmatprep.subr.bf16.mxu0 0
        %623 = vmatpush2.bf16.msra.mxu0 0
        %624 = vmatprep.subr.bf16.mxu0 0
        %625 = vmatpush2.bf16.msra.mxu0 0
        %626 = vmatprep.subr.bf16.mxu0 0
        %627 = vmatpush2.bf16.msra.mxu0 0
        %628 = vmatprep.subr.bf16.mxu0 0
        %629 = vmatpush2.bf16.msra.mxu0 0
        %630 = vmatprep.subr.bf16.mxu0 0
        %631 = vmatpush2.bf16.msra.mxu0 0
        %632 = vmatprep.subr.bf16.mxu0 0
        %633 = vmatpush2.bf16.msra.mxu0 0
        %634 = vmatprep.subr.bf16.mxu0 0
        %635 = vmatpush2.bf16.msra.mxu0 0
        %636 = vmatprep.subr.bf16.mxu0 0
        %637 = vmatpush2.bf16.msra.mxu0 0
        %638 = vmatprep.mubr.bf16.mxu0 0
        %639 = vmatmul.mubr.bf16.gmra.mxu0 %v594
        %v640 = vpop.f32.mrf.mxu0
        %v641 = vadd.f32 0.0, %v640
        %v642 = vpop.f32.mrf.mxu0
        %v643 = vadd.f32 0.0, %v642
        %v644 = vpop.f32.mrf.mxu0
        %v645 = vadd.f32 0.0, %v644
        %v646 = vpop.f32.mrf.mxu0
        %v647 = vadd.f32 0.0, %v646
        %648 = vdwg.mxu0
        %649 = vmatprep.subr.bf16.mxu0 0
        %650 = vmatpush1.bf16.msra.mxu0 0
        %651 = vmatprep.subr.bf16.mxu0 0
        %652 = vmatpush1.bf16.msra.mxu0 0
        %653 = vmatprep.subr.bf16.mxu0 0
        %654 = vmatpush1.bf16.msra.mxu0 0
        %655 = vmatprep.subr.bf16.mxu0 0
        %656 = vmatpush1.bf16.msra.mxu0 0
        %657 = vmatprep.subr.bf16.mxu0 0
        %658 = vmatpush1.bf16.msra.mxu0 0
        %659 = vmatprep.subr.bf16.mxu0 0
        %660 = vmatpush1.bf16.msra.mxu0 %v604
        %661 = vmatprep.subr.bf16.mxu0 0
        %662 = vmatpush1.bf16.msra.mxu0 %v582
        %663 = vmatprep.subr.bf16.mxu0 0
        %664 = vmatpush1.bf16.msra.mxu0 %v579
        %665 = vmatprep.subr.bf16.mxu0 0
        %666 = vmatpush2.bf16.msra.mxu0 0
        %667 = vmatprep.subr.bf16.mxu0 0
        %668 = vmatpush2.bf16.msra.mxu0 0
        %669 = vmatprep.subr.bf16.mxu0 0
        %670 = vmatpush2.bf16.msra.mxu0 0
        %671 = vmatprep.subr.bf16.mxu0 0
        %672 = vmatpush2.bf16.msra.mxu0 0
        %673 = vmatprep.subr.bf16.mxu0 0
        %674 = vmatpush2.bf16.msra.mxu0 0
        %675 = vmatprep.subr.bf16.mxu0 0
        %676 = vmatpush2.bf16.msra.mxu0 0
        %677 = vmatprep.subr.bf16.mxu0 0
        %678 = vmatpush2.bf16.msra.mxu0 0
        %679 = vmatprep.subr.bf16.mxu0 0
        %680 = vmatpush2.bf16.msra.mxu0 0
        %681 = vmatprep.mubr.bf16.mxu0 0
        %682 = vmatmul.mubr.bf16.gmra.mxu0 %v594
        %v683 = vpop.f32.mrf.mxu0
        %v684 = vadd.f32 0.0, %v683
        %v685 = vpop.f32.mrf.mxu0
        %v686 = vpop.f32.mrf.mxu0
        %v687 = vadd.f32 0.0, %v686
        %v688 = vpop.f32.mrf.mxu0
        %689 = vdwg.mxu0
        %v691 = vlaneseq
        %v692 = vshrl.u32 %v691, 7
        %v693 = vsub.s32 0, %v692
        %v694 = vrot.slane %v270, %v693
        %v695 = vlaneseq
        %v696 = vshrl.u32 %v695, 7
        %v697 = vsub.s32 1, %v696
        %v698 = vrot.slane %v270, %v697
        %v699 = vlaneseq
        %v700 = vshrl.u32 %v699, 7
        %v701 = vsub.s32 2, %v700
        %v702 = vrot.slane %v270, %v701
        %v706 = vmul.f32 %v641, %v694
        %v707 = vmul.f32 %v643, %v698
        %v708 = vmul.f32 %v684, %v702
        %v709 = vmul.f32 %v645, %v694
        %v710 = vmul.f32 %v647, %v698
        %v711 = vmul.f32 %v687, %v702
        %v712 = vadd.f32 %v706, %v707
        %vm713 = vcmask 261120
        %v714 = vsel %vm713, %v708, 0.0
        %v715 = vadd.f32 %v712, %v714
        %716 = vadd.xlane.f32.xlu0 %v715
        %v717 = vpop.xlane.xlu0 %716
        %v718 = vadd.f32 %v709, %v710
        %v719 = vsel %vm713, %v711, 0.0
        %v720 = vadd.f32 %v718, %v719
        %721 = vadd.xlane.f32.xlu0 %v720
        %v722 = vpop.xlane.xlu0 %721
        %v723 = vadd.f32 %v717, 0.0
        %v724 = vadd.f32 %v722, 0.0
        %v725 = vmul.f32 %v706, %v641
        %v726 = vmul.f32 %v707, %v643
        %v727 = vmul.f32 %v708, %v684
        %v728 = vmul.f32 %v709, %v645
        %v729 = vmul.f32 %v710, %v647
        %v730 = vmul.f32 %v711, %v687
        %v731 = vadd.f32 %v725, %v726
        %v732 = vsel %vm713, %v727, 0.0
        %v733 = vadd.f32 %v731, %v732
        %734 = vadd.xlane.f32.xlu0 %v733
        %v735 = vpop.xlane.xlu0 %734
        %v736 = vadd.f32 %v728, %v729
        %v737 = vsel %vm713, %v730, 0.0
        %v738 = vadd.f32 %v736, %v737
        %739 = vadd.xlane.f32.xlu0 %v738
        %v740 = vpop.xlane.xlu0 %739
        %v741 = vadd.f32 %v735, 0.0
        %v742 = vadd.f32 %v740, 0.0
        %s743 = scalar_lea.vmem %s1, 6
        %v744 = vld [vmem:[%s743] sm:$0x3f]
        %v746 = vcombine.high %v744, %v744
        %v748 = vunpack.c.l.s4 1983009808
        %v749 = vunpack.c.0.s8 %v748
        %v750 = vlaneseq
        %v751 = vshrl.u32 %v750, 7
        %v752 = vsub.s32 %v749, %v751
        %v753 = vrot.slane %v744, %v752
        %v755 = vunpack.c.l.s4 1983009808
        %v756 = vunpack.c.0.s8 %v755
        %v757 = vlaneseq
        %v758 = vshrl.u32 %v757, 7
        %v759 = vsub.s32 %v756, %v758
        %v760 = vrot.slane %v746, %v759
        %763 = vst [vmem:[#allocation2] sm:$0x33] %v753
        %764 = vst.msk [vmem:[#allocation2 + $0x8] sm:$0x3] %vm294, %v760
        %v765 = vld [vmem:[%s743] sm:$0x3f]
        %v767 = vcombine.low %v765, %v765
        %v769 = vunpack.c.l.s4 1983009808
        %v770 = vunpack.c.0.s8 %v769
        %v771 = vlaneseq
        %v772 = vshrl.u32 %v771, 7
        %v773 = vsub.s32 %v770, %v772
        %v774 = vrot.slane %v767, %v773
        %v776 = vunpack.c.l.s4 1983009808
        %v777 = vunpack.c.0.s8 %v776
        %v778 = vlaneseq
        %v779 = vshrl.u32 %v778, 7
        %v780 = vsub.s32 %v777, %v779
        %v781 = vrot.slane %v765, %v780
        %782 = vrot.lane.b32.xlu0 %v774, 127
        %v783 = vpop.permute.xlu0 %782
        %784 = vrot.lane.b32.xlu0 %v781, 127
        %v785 = vpop.permute.xlu0 %784
        %v786 = vrot.slane %v783, 4
        %v787 = vrot.slane %v785, 4
        %v788 = vsel %vm319, %v786, %v787
        %v789 = vsel %vm321, %v783, %v788
        %792 = vst [vmem:[#allocation2] sm:$0xcc] %v789
        %793 = vst.msk [vmem:[#allocation2 + $0x8] sm:$0xc] %vm272, %v785
        %v794 = vld [vmem:[%s743] sm:$0x3f]
        %v796 = vcombine.high %v794, %v794
        %v798 = vunpack.c.l.s4 1983009808
        %v799 = vunpack.c.0.s8 %v798
        %v800 = vlaneseq
        %v801 = vshrl.u32 %v800, 7
        %v802 = vsub.s32 %v799, %v801
        %v803 = vrot.slane %v794, %v802
        %v805 = vunpack.c.l.s4 1983009808
        %v806 = vunpack.c.0.s8 %v805
        %v807 = vlaneseq
        %v808 = vshrl.u32 %v807, 7
        %v809 = vsub.s32 %v806, %v808
        %v810 = vrot.slane %v796, %v809
        %811 = vrot.lane.b32.xlu0 %v803, 126
        %v812 = vpop.permute.xlu0 %811
        %813 = vrot.lane.b32.xlu0 %v810, 126
        %v814 = vpop.permute.xlu0 %813
        %v815 = vrot.slane %v812, 4
        %v816 = vrot.slane %v814, 4
        %v817 = vsel %vm319, %v815, %v816
        %v818 = vsel %vm351, %v812, %v817
        %821 = vst [vmem:[#allocation2 + $0xc] sm:$0x33] %v818
        %822 = vst.msk [vmem:[#allocation2 + $0x14] sm:$0x3] %vm294, %v814
        %v823 = vld [vmem:[%s743] sm:$0x3f]
        %v825 = vcombine.low %v823, %v823
        %v827 = vunpack.c.l.s4 1983009808
        %v828 = vunpack.c.0.s8 %v827
        %v829 = vlaneseq
        %v830 = vshrl.u32 %v829, 7
        %v831 = vsub.s32 %v828, %v830
        %v832 = vrot.slane %v825, %v831
        %v834 = vunpack.c.l.s4 1983009808
        %v835 = vunpack.c.0.s8 %v834
        %v836 = vlaneseq
        %v837 = vshrl.u32 %v836, 7
        %v838 = vsub.s32 %v835, %v837
        %v839 = vrot.slane %v823, %v838
        %840 = vrot.lane.b32.xlu0 %v832, 110
        %v841 = vpop.permute.xlu0 %840
        %842 = vrot.lane.b32.xlu0 %v839, 110
        %v843 = vpop.permute.xlu0 %842
        %v844 = vrot.slane %v841, 4
        %v845 = vrot.slane %v843, 4
        %v846 = vsel %vm319, %v844, %v845
        %v847 = vsel %vm381, %v841, %v846
        %850 = vst [vmem:[#allocation2 + $0xc] sm:$0xcc] %v847
        %851 = vst.msk [vmem:[#allocation2 + $0x14] sm:$0xc] %vm272, %v843
        %v852 = vld [vmem:[%s743] sm:$0x3f]
        %v854 = vcombine.high %v852, %v852
        %v856 = vunpack.c.l.s4 1983009808
        %v857 = vunpack.c.0.s8 %v856
        %v858 = vlaneseq
        %v859 = vshrl.u32 %v858, 7
        %v860 = vsub.s32 %v857, %v859
        %v861 = vrot.slane %v852, %v860
        %v863 = vunpack.c.l.s4 1983009808
        %v864 = vunpack.c.0.s8 %v863
        %v865 = vlaneseq
        %v866 = vshrl.u32 %v865, 7
        %v867 = vsub.s32 %v864, %v866
        %v868 = vrot.slane %v854, %v867
        %869 = vrot.lane.b32.xlu0 %v861, 109
        %v870 = vpop.permute.xlu0 %869
        %871 = vrot.lane.b32.xlu0 %v868, 109
        %v872 = vpop.permute.xlu0 %871
        %v873 = vrot.slane %v870, 4
        %v874 = vrot.slane %v872, 4
        %v875 = vsel %vm319, %v873, %v874
        %v876 = vsel %vm411, %v870, %v875
        %879 = vst [vmem:[#allocation2 + $0x18] sm:$0x33] %v876
        %880 = vst.msk [vmem:[#allocation2 + $0x20] sm:$0x3] %vm294, %v872
        %v881 = vld [vmem:[%s743] sm:$0x3f]
        %v883 = vcombine.low %v881, %v881
        %v885 = vunpack.c.l.s4 1983009808
        %v886 = vunpack.c.0.s8 %v885
        %v887 = vlaneseq
        %v888 = vshrl.u32 %v887, 7
        %v889 = vsub.s32 %v886, %v888
        %v890 = vrot.slane %v883, %v889
        %v892 = vunpack.c.l.s4 1983009808
        %v893 = vunpack.c.0.s8 %v892
        %v894 = vlaneseq
        %v895 = vshrl.u32 %v894, 7
        %v896 = vsub.s32 %v893, %v895
        %v897 = vrot.slane %v881, %v896
        %898 = vrot.lane.b32.xlu0 %v890, 108
        %v899 = vpop.permute.xlu0 %898
        %900 = vrot.lane.b32.xlu0 %v897, 108
        %v901 = vpop.permute.xlu0 %900
        %v902 = vrot.slane %v899, 4
        %v903 = vrot.slane %v901, 4
        %v904 = vsel %vm319, %v902, %v903
        %v905 = vsel %vm441, %v899, %v904
        %908 = vst [vmem:[#allocation2 + $0x18] sm:$0xcc] %v905
        %909 = vst.msk [vmem:[#allocation2 + $0x20] sm:$0xc] %vm272, %v901
        %v910 = vld [vmem:[%s743] sm:$0x3f]
        %v912 = vcombine.high %v910, %v910
        %v914 = vunpack.c.l.s4 1983009808
        %v915 = vunpack.c.0.s8 %v914
        %v916 = vlaneseq
        %v917 = vshrl.u32 %v916, 7
        %v918 = vsub.s32 %v915, %v917
        %v919 = vrot.slane %v910, %v918
        %v921 = vunpack.c.l.s4 1983009808
        %v922 = vunpack.c.0.s8 %v921
        %v923 = vlaneseq
        %v924 = vshrl.u32 %v923, 7
        %v925 = vsub.s32 %v922, %v924
        %v926 = vrot.slane %v912, %v925
        %927 = vrot.lane.b32.xlu0 %v919, 92
        %v928 = vpop.permute.xlu0 %927
        %929 = vrot.lane.b32.xlu0 %v926, 92
        %v930 = vpop.permute.xlu0 %929
        %v931 = vrot.slane %v928, 4
        %v932 = vrot.slane %v930, 4
        %v933 = vsel %vm319, %v931, %v932
        %v934 = vsel %vm471, %v928, %v933
        %937 = vst [vmem:[#allocation2 + $0x24] sm:$0x33] %v934
        %938 = vst.msk [vmem:[#allocation2 + $0x2c] sm:$0x3] %vm294, %v930
        %v939 = vld [vmem:[%s743] sm:$0x3f]
        %v941 = vcombine.low %v939, %v939
        %v943 = vunpack.c.l.s4 1983009808
        %v944 = vunpack.c.0.s8 %v943
        %v945 = vlaneseq
        %v946 = vshrl.u32 %v945, 7
        %v947 = vsub.s32 %v944, %v946
        %v948 = vrot.slane %v941, %v947
        %v950 = vunpack.c.l.s4 1983009808
        %v951 = vunpack.c.0.s8 %v950
        %v952 = vlaneseq
        %v953 = vshrl.u32 %v952, 7
        %v954 = vsub.s32 %v951, %v953
        %v955 = vrot.slane %v939, %v954
        %956 = vrot.lane.b32.xlu0 %v948, 91
        %v957 = vpop.permute.xlu0 %956
        %958 = vrot.lane.b32.xlu0 %v955, 91
        %v959 = vpop.permute.xlu0 %958
        %v960 = vrot.slane %v957, 4
        %v961 = vrot.slane %v959, 4
        %v962 = vsel %vm319, %v960, %v961
        %v963 = vsel %vm501, %v957, %v962
        %966 = vst [vmem:[#allocation2 + $0x24] sm:$0xcc] %v963
        %967 = vst.msk [vmem:[#allocation2 + $0x2c] sm:$0xc] %vm272, %v959
        %v968 = vld [vmem:[%s743] sm:$0x3f]
        %v970 = vcombine.high %v968, %v968
        %v972 = vunpack.c.l.s4 1983009808
        %v973 = vunpack.c.0.s8 %v972
        %v974 = vlaneseq
        %v975 = vshrl.u32 %v974, 7
        %v976 = vsub.s32 %v973, %v975
        %v977 = vrot.slane %v968, %v976
        %v979 = vunpack.c.l.s4 1983009808
        %v980 = vunpack.c.0.s8 %v979
        %v981 = vlaneseq
        %v982 = vshrl.u32 %v981, 7
        %v983 = vsub.s32 %v980, %v982
        %v984 = vrot.slane %v970, %v983
        %985 = vrot.lane.b32.xlu0 %v977, 90
        %v986 = vpop.permute.xlu0 %985
        %987 = vrot.lane.b32.xlu0 %v984, 90
        %v988 = vpop.permute.xlu0 %987
        %v989 = vrot.slane %v986, 4
        %v990 = vrot.slane %v988, 4
        %v991 = vsel %vm319, %v989, %v990
        %v992 = vsel %vm531, %v986, %v991
        %995 = vst [vmem:[#allocation2 + $0x30] sm:$0x33] %v992
        %996 = vst.msk [vmem:[#allocation2 + $0x38] sm:$0x3] %vm294, %v988
        %v997 = vld [vmem:[#allocation2] sm:$0xff]
        %v998 = vld [vmem:[#allocation2 + $0x8] sm:$0xf]
        %v999 = vld [vmem:[#allocation2 + $0xc] sm:$0xff]
        %v1000 = vld [vmem:[#allocation2 + $0x14] sm:$0xf]
        %v1001 = vld [vmem:[#allocation2 + $0x18] sm:$0xff]
        %v1002 = vld [vmem:[#allocation2 + $0x20] sm:$0xf]
        %v1003 = vld [vmem:[#allocation2 + $0x24] sm:$0xff]
        %v1004 = vld [vmem:[#allocation2 + $0x2c] sm:$0xf]
        %v1005 = vld [vmem:[#allocation2 + $0x30] sm:$0xff]
        %v1006 = vld [vmem:[#allocation2 + $0x38] sm:$0xf]
        %v1017 = vunpack.c.l.b16 %v997
        %v1018 = vunpack.c.h.b16 %v997
        %v1019 = vunpack.c.l.b16 %v998
        %v1020 = vunpack.c.l.b16 %v999
        %v1021 = vunpack.c.h.b16 %v999
        %v1022 = vunpack.c.l.b16 %v1000
        %v1023 = vunpack.c.l.b16 %v1001
        %v1024 = vunpack.c.h.b16 %v1001
        %v1025 = vunpack.c.l.b16 %v1002
        %v1026 = vunpack.c.l.b16 %v1003
        %v1027 = vunpack.c.h.b16 %v1003
        %v1028 = vunpack.c.l.b16 %v1004
        %v1029 = vunpack.c.l.b16 %v1005
        %v1030 = vunpack.c.h.b16 %v1005
        %v1031 = vunpack.c.l.b16 %v1006
        %v1032 = vpack.c.b16 %v1020, %v1017
        %v1033 = vpack.c.b16 %v1021, %v1018
        %v1034 = vpack.c.b16 %v1022, %v1019
        %v1035 = vpack.c.b16 %v1026, %v1023
        %v1036 = vpack.c.b16 %v1027, %v1024
        %v1037 = vpack.c.b16 %v1028, %v1025
        %v1038 = vpack.c.b16 %v1029, %v1029
        %v1039 = vpack.c.b16 %v1030, %v1030
        %v1040 = vpack.c.b16 %v1031, %v1031
        %v1048 = vsel %vm596, %v1038, 0
        %v1051 = vsel %vm596, %v1039, 0
        %v1054 = vsel %vm596, %v1040, 0
        %1056 = vmatprep.subr.bf16.mxu0 0
        %1057 = vmatpush1.bf16.msra.mxu0 0
        %1058 = vmatprep.subr.bf16.mxu0 0
        %1059 = vmatpush1.bf16.msra.mxu0 0
        %1060 = vmatprep.subr.bf16.mxu0 0
        %1061 = vmatpush1.bf16.msra.mxu0 0
        %1062 = vmatprep.subr.bf16.mxu0 0
        %1063 = vmatpush1.bf16.msra.mxu0 0
        %1064 = vmatprep.subr.bf16.mxu0 0
        %1065 = vmatpush1.bf16.msra.mxu0 0
        %1066 = vmatprep.subr.bf16.mxu0 %v1051
        %1067 = vmatpush1.bf16.msra.mxu0 %v1048
        %1068 = vmatprep.subr.bf16.mxu0 %v1036
        %1069 = vmatpush1.bf16.msra.mxu0 %v1035
        %1070 = vmatprep.subr.bf16.mxu0 %v1033
        %1071 = vmatpush1.bf16.msra.mxu0 %v1032
        %1072 = vmatprep.subr.bf16.mxu0 0
        %1073 = vmatpush2.bf16.msra.mxu0 0
        %1074 = vmatprep.subr.bf16.mxu0 0
        %1075 = vmatpush2.bf16.msra.mxu0 0
        %1076 = vmatprep.subr.bf16.mxu0 0
        %1077 = vmatpush2.bf16.msra.mxu0 0
        %1078 = vmatprep.subr.bf16.mxu0 0
        %1079 = vmatpush2.bf16.msra.mxu0 0
        %1080 = vmatprep.subr.bf16.mxu0 0
        %1081 = vmatpush2.bf16.msra.mxu0 0
        %1082 = vmatprep.subr.bf16.mxu0 0
        %1083 = vmatpush2.bf16.msra.mxu0 0
        %1084 = vmatprep.subr.bf16.mxu0 0
        %1085 = vmatpush2.bf16.msra.mxu0 0
        %1086 = vmatprep.subr.bf16.mxu0 0
        %1087 = vmatpush2.bf16.msra.mxu0 0
        %1088 = vmatprep.mubr.bf16.mxu0 0
        %1089 = vmatmul.mubr.bf16.gmra.mxu0 %v594
        %v1090 = vpop.f32.mrf.mxu0
        %v1091 = vadd.f32 0.0, %v1090
        %v1092 = vpop.f32.mrf.mxu0
        %v1093 = vadd.f32 0.0, %v1092
        %v1094 = vpop.f32.mrf.mxu0
        %v1095 = vadd.f32 0.0, %v1094
        %v1096 = vpop.f32.mrf.mxu0
        %v1097 = vadd.f32 0.0, %v1096
        %1098 = vdwg.mxu0
        %1099 = vmatprep.subr.bf16.mxu0 0
        %1100 = vmatpush1.bf16.msra.mxu0 0
        %1101 = vmatprep.subr.bf16.mxu0 0
        %1102 = vmatpush1.bf16.msra.mxu0 0
        %1103 = vmatprep.subr.bf16.mxu0 0
        %1104 = vmatpush1.bf16.msra.mxu0 0
        %1105 = vmatprep.subr.bf16.mxu0 0
        %1106 = vmatpush1.bf16.msra.mxu0 0
        %1107 = vmatprep.subr.bf16.mxu0 0
        %1108 = vmatpush1.bf16.msra.mxu0 0
        %1109 = vmatprep.subr.bf16.mxu0 0
        %1110 = vmatpush1.bf16.msra.mxu0 %v1054
        %1111 = vmatprep.subr.bf16.mxu0 0
        %1112 = vmatpush1.bf16.msra.mxu0 %v1037
        %1113 = vmatprep.subr.bf16.mxu0 0
        %1114 = vmatpush1.bf16.msra.mxu0 %v1034
        %1115 = vmatprep.subr.bf16.mxu0 0
        %1116 = vmatpush2.bf16.msra.mxu0 0
        %1117 = vmatprep.subr.bf16.mxu0 0
        %1118 = vmatpush2.bf16.msra.mxu0 0
        %1119 = vmatprep.subr.bf16.mxu0 0
        %1120 = vmatpush2.bf16.msra.mxu0 0
        %1121 = vmatprep.subr.bf16.mxu0 0
        %1122 = vmatpush2.bf16.msra.mxu0 0
        %1123 = vmatprep.subr.bf16.mxu0 0
        %1124 = vmatpush2.bf16.msra.mxu0 0
        %1125 = vmatprep.subr.bf16.mxu0 0
        %1126 = vmatpush2.bf16.msra.mxu0 0
        %1127 = vmatprep.subr.bf16.mxu0 0
        %1128 = vmatpush2.bf16.msra.mxu0 0
        %1129 = vmatprep.subr.bf16.mxu0 0
        %1130 = vmatpush2.bf16.msra.mxu0 0
        %1131 = vmatprep.mubr.bf16.mxu0 0
        %1132 = vmatmul.mubr.bf16.gmra.mxu0 %v594
        %v1133 = vpop.f32.mrf.mxu0
        %v1134 = vadd.f32 0.0, %v1133
        %v1135 = vpop.f32.mrf.mxu0
        %v1136 = vpop.f32.mrf.mxu0
        %v1137 = vadd.f32 0.0, %v1136
        %v1138 = vpop.f32.mrf.mxu0
        %1139 = vdwg.mxu0
        %v1140 = vmul.f32 %v1091, %v694
        %v1141 = vmul.f32 %v1093, %v698
        %v1142 = vmul.f32 %v1134, %v702
        %v1143 = vmul.f32 %v1095, %v694
        %v1144 = vmul.f32 %v1097, %v698
        %v1145 = vmul.f32 %v1137, %v702
        %v1146 = vadd.f32 %v1140, %v1141
        %v1147 = vsel %vm713, %v1142, 0.0
        %v1148 = vadd.f32 %v1146, %v1147
        %1149 = vadd.xlane.f32.xlu0 %v1148
        %v1150 = vpop.xlane.xlu0 %1149
        %v1151 = vadd.f32 %v1143, %v1144
        %v1152 = vsel %vm713, %v1145, 0.0
        %v1153 = vadd.f32 %v1151, %v1152
        %1154 = vadd.xlane.f32.xlu0 %v1153
        %v1155 = vpop.xlane.xlu0 %1154
        %v1156 = vadd.f32 %v723, %v1150
        %v1157 = vadd.f32 %v724, %v1155
        %v1158 = vmul.f32 %v1140, %v1091
        %v1159 = vmul.f32 %v1141, %v1093
        %v1160 = vmul.f32 %v1142, %v1134
        %v1161 = vmul.f32 %v1143, %v1095
        %v1162 = vmul.f32 %v1144, %v1097
        %v1163 = vmul.f32 %v1145, %v1137
        %v1164 = vadd.f32 %v1158, %v1159
        %v1165 = vsel %vm713, %v1160, 0.0
        %v1166 = vadd.f32 %v1164, %v1165
        %1167 = vadd.xlane.f32.xlu0 %v1166
        %v1168 = vpop.xlane.xlu0 %1167
        %v1169 = vadd.f32 %v1161, %v1162
        %v1170 = vsel %vm713, %v1163, 0.0
        %v1171 = vadd.f32 %v1169, %v1170
        %1172 = vadd.xlane.f32.xlu0 %v1171
        %v1173 = vpop.xlane.xlu0 %1172
        %v1174 = vadd.f32 %v741, %v1168
        %v1175 = vadd.f32 %v742, %v1173
        %v1177 = vrot.slane %v1156, 4
        %v1179 = vadd.f32 %v1156, %v1177
        %v1180 = vadd.f32 %v1179, %v1157
        %v1182 = vrot.slane %v1157, 4
        %v1184 = vadd.f32 %v1180, %v1182
        %v1186 = vrot.slane %v1174, 4
        %v1188 = vadd.f32 %v1174, %v1186
        %v1189 = vadd.f32 %v1188, %v1175
        %v1191 = vrot.slane %v1175, 4
        %v1193 = vadd.f32 %v1189, %v1191
        %v1194 = vmul.f32 %v1184, 0.00048828125
        %v1195 = vmul.f32 %v1193, 0.00048828125
        %v1196 = vmul.f32 %v1194, %v1194
        %v1197 = vsub.f32 %v1195, %v1196
        %v1198 = vmax.f32 %v1197, 0.0
        %v1199 = vld [vmem:[%s261] sm:$0xf]
        %v1200 = vadd.f32 %v1198, 1e-05
        %v1201 = vrsqrt.pop %v1200
        %v1202 = vmul.f32 %v1199, %v1201
        %v1203 = vld [vmem:[%s265] sm:$0xf]
        %v1204 = vmul.f32 %v1194, %v1202
        %v1205 = vsub.f32 %v1203, %v1204
        %1207 = vset.pattern.permute.xlu0 0
        %1208 = vperm.xlu0 %1207, %v1202
        %v1209 = vpop.permute.xlu0 %1208
        %v1211 = vmul.f32 %v641, %v1209
        %v1212 = vmul.f32 %v643, %v1209
        %v1213 = vmul.f32 %v684, %v1209
        %1215 = vset.pattern.permute.xlu0 0
        %1216 = vperm.xlu0 %1215, %v1205
        %v1217 = vpop.permute.xlu0 %1216
        %v1219 = vadd.f32 %v1211, %v1217
        %v1220 = vadd.f32 %v1212, %v1217
        %v1221 = vadd.f32 %v1213, %v1217
        %v1222 = vmax.f32 %v1219, 0.0
        %v1223 = vmax.f32 %v1220, 0.0
        %v1224 = vmax.f32 %v1221, 0.0
        %1225 = vst [vmem:[%s252] sm:$0xf] %v1222
        %1226 = vst [vmem:[%s252 + $0x8] sm:$0xf] %v1223
        %vm1227 = vcmask 257024
        %1228 = vst.msk [vmem:[%s252 + $0x10] sm:$0xf] %vm1227, %v1224
        %v1229 = vrot.slane %v1209, 4
        %v1231 = vmul.f32 %v641, %v1229
        %v1232 = vmul.f32 %v643, %v1229
        %v1233 = vmul.f32 %v684, %v1229
        %v1234 = vrot.slane %v1217, 4
        %v1236 = vadd.f32 %v1231, %v1234
        %v1237 = vadd.f32 %v1232, %v1234
        %v1238 = vadd.f32 %v1233, %v1234
        %v1239 = vmax.f32 %v1236, 0.0
        %v1240 = vmax.f32 %v1237, 0.0
        %v1241 = vmax.f32 %v1238, 0.0
        %1242 = vst [vmem:[%s252] sm:$0xf0] %v1239
        %1243 = vst [vmem:[%s252 + $0x8] sm:$0xf0] %v1240
        %vm1244 = vcmask 261124
        %1245 = vst.msk [vmem:[%s252 + $0x10] sm:$0xf0] %vm1244, %v1241
        %v1246 = vmul.f32 %v645, %v1209
        %v1247 = vmul.f32 %v647, %v1209
        %v1248 = vmul.f32 %v687, %v1209
        %v1249 = vadd.f32 %v1246, %v1217
        %v1250 = vadd.f32 %v1247, %v1217
        %v1251 = vadd.f32 %v1248, %v1217
        %v1252 = vmax.f32 %v1249, 0.0
        %v1253 = vmax.f32 %v1250, 0.0
        %v1254 = vmax.f32 %v1251, 0.0
        %1255 = vst [vmem:[%s252 + $0x18] sm:$0xf] %v1252
        %1256 = vst [vmem:[%s252 + $0x20] sm:$0xf] %v1253
        %1257 = vst.msk [vmem:[%s252 + $0x28] sm:$0xf] %vm1227, %v1254
        %v1258 = vmul.f32 %v645, %v1229
        %v1259 = vmul.f32 %v647, %v1229
        %v1260 = vmul.f32 %v687, %v1229
        %v1261 = vadd.f32 %v1258, %v1234
        %v1262 = vadd.f32 %v1259, %v1234
        %v1263 = vadd.f32 %v1260, %v1234
        %v1264 = vmax.f32 %v1261, 0.0
        %v1265 = vmax.f32 %v1262, 0.0
        %v1266 = vmax.f32 %v1263, 0.0
        %1267 = vst [vmem:[%s252 + $0x18] sm:$0xf0] %v1264
        %1268 = vst [vmem:[%s252 + $0x20] sm:$0xf0] %v1265
        %1269 = vst.msk [vmem:[%s252 + $0x28] sm:$0xf0] %vm1244, %v1266
        %v1270 = vmul.f32 %v1091, %v1209
        %v1271 = vmul.f32 %v1093, %v1209
        %v1272 = vmul.f32 %v1134, %v1209
        %v1273 = vadd.f32 %v1270, %v1217
        %v1274 = vadd.f32 %v1271, %v1217
        %v1275 = vadd.f32 %v1272, %v1217
        %v1276 = vmax.f32 %v1273, 0.0
        %v1277 = vmax.f32 %v1274, 0.0
        %v1278 = vmax.f32 %v1275, 0.0
        %s1279 = scalar_lea.vmem %s252, 48 [#allocation5]
        %1280 = vst [vmem:[%s1279] sm:$0xf] %v1276
        %1281 = vst [vmem:[%s1279 + $0x8] sm:$0xf] %v1277
        %1282 = vst.msk [vmem:[%s1279 + $0x10] sm:$0xf] %vm1227, %v1278
        %v1283 = vmul.f32 %v1091, %v1229
        %v1284 = vmul.f32 %v1093, %v1229
        %v1285 = vmul.f32 %v1134, %v1229
        %v1286 = vadd.f32 %v1283, %v1234
        %v1287 = vadd.f32 %v1284, %v1234
        %v1288 = vadd.f32 %v1285, %v1234
        %v1289 = vmax.f32 %v1286, 0.0
        %v1290 = vmax.f32 %v1287, 0.0
        %v1291 = vmax.f32 %v1288, 0.0
        %1292 = vst [vmem:[%s1279] sm:$0xf0] %v1289
        %1293 = vst [vmem:[%s1279 + $0x8] sm:$0xf0] %v1290
        %1294 = vst.msk [vmem:[%s1279 + $0x10] sm:$0xf0] %vm1244, %v1291
        %v1295 = vmul.f32 %v1095, %v1209
        %v1296 = vmul.f32 %v1097, %v1209
        %v1297 = vmul.f32 %v1137, %v1209
        %v1298 = vadd.f32 %v1295, %v1217
        %v1299 = vadd.f32 %v1296, %v1217
        %v1300 = vadd.f32 %v1297, %v1217
        %v1301 = vmax.f32 %v1298, 0.0
        %v1302 = vmax.f32 %v1299, 0.0
        %v1303 = vmax.f32 %v1300, 0.0
        %1304 = vst [vmem:[%s1279 + $0x18] sm:$0xf] %v1301
        %1305 = vst [vmem:[%s1279 + $0x20] sm:$0xf] %v1302
        %1306 = vst.msk [vmem:[%s1279 + $0x28] sm:$0xf] %vm1227, %v1303
        %v1307 = vmul.f32 %v1095, %v1229
        %v1308 = vmul.f32 %v1097, %v1229
        %v1309 = vmul.f32 %v1137, %v1229
        %v1310 = vadd.f32 %v1307, %v1234
        %v1311 = vadd.f32 %v1308, %v1234
        %v1312 = vadd.f32 %v1309, %v1234
        %v1313 = vmax.f32 %v1310, 0.0
        %v1314 = vmax.f32 %v1311, 0.0
        %v1315 = vmax.f32 %v1312, 0.0
        %1316 = vst [vmem:[%s1279 + $0x18] sm:$0xf0] %v1313
        %1317 = vst [vmem:[%s1279 + $0x20] sm:$0xf0] %v1314
        %1318 = vst.msk [vmem:[%s1279 + $0x28] sm:$0xf0] %vm1244, %v1315
        %s1319 = sand.u32 %s145, 1
        %s1320 = sand.u32 %s145, 1
        %s1321 = smul.addr %s1320, 96
        %s1322 = scalar_lea.vmem [#allocation5], %s1321
        // Predicated region
        $region45: #{g_block_forward.1} parent=39 // pred_check
          %p1323 = pneg %p155
        $region46: #{g_block_forward.1} parent=39 // pred_check_branch
          %1325 = sbr.rel (%p1323) target = $region48
        $region47: #{g_block_forward.1} parent=39 // pred_region
          %s1326 = smul.u32 2, %s17
          %s1327 = smul.addr %s1326, 3
          %s1328 = smul.addr %s1327, 8
          %s1329 = scalar_lea.vmem %s5, %s1328
          // Predicated region
          $region49: #{g_block_forward.1} parent=47 // pred_check
            _
          $region50: #{g_block_forward.1} parent=47 // pred_check_branch
            %1331 = sbr.rel (0) target = $region52
          $region51: #{g_block_forward.1} parent=47 // pred_region
            // Predicated region
            $region53: #{g_block_forward.1} parent=51 // pred_check
              _
            $region54: #{g_block_forward.1} parent=51 // pred_check_branch
              %1333 = sbr.rel (0) target = $region56
            $region55: #{g_block_forward.1} parent=51 // pred_region
              loop: start=0, step=1, limit=1
              $region57: #{g_block_forward.1} parent=55 // loop_pre_header
                _
              $region58: #{g_block_forward.1} parent=55 // loop_header
                %s1335 = sphi 0, %s1339
                %p1336 = scmp.ge.s32.totalorder %s1335, 1
                %s1340 = sphi %s1322, %s1322
                %s1341 = sphi %s1329, %s1329
              $region59: #{g_block_forward.1} parent=55 // loop_header_branch
                %1338 = sbr.rel (%p1336) target = $region63
              $region60: #{g_block_forward.1} parent=55 // loop_body
                %v1342 = vld [vmem:[%s1340] sm:$0xff]
                %1343 = vst [vmem:[%s1341] sm:$0xff] %v1342
                %v1344 = vld [vmem:[%s1340 + $0x8] sm:$0xff]
                %1345 = vst [vmem:[%s1341 + $0x8] sm:$0xff] %v1344
                %v1346 = vld [vmem:[%s1340 + $0x10] sm:$0xff]
                %1347 = vst [vmem:[%s1341 + $0x10] sm:$0xff] %v1346
                %v1348 = vld [vmem:[%s1340 + $0x18] sm:$0xff]
                %1349 = vst [vmem:[%s1341 + $0x18] sm:$0xff] %v1348
                %v1350 = vld [vmem:[%s1340 + $0x20] sm:$0xff]
                %1351 = vst [vmem:[%s1341 + $0x20] sm:$0xff] %v1350
                %v1352 = vld [vmem:[%s1340 + $0x28] sm:$0xff]
                %1353 = vst [vmem:[%s1341 + $0x28] sm:$0xff] %v1352
                %v1354 = vld [vmem:[%s1340 + $0x30] sm:$0xff]
                %1355 = vst [vmem:[%s1341 + $0x60] sm:$0xff] %v1354
                %v1356 = vld [vmem:[%s1340 + $0x38] sm:$0xff]
                %1357 = vst [vmem:[%s1341 + $0x68] sm:$0xff] %v1356
                %v1358 = vld [vmem:[%s1340 + $0x40] sm:$0xff]
                %1359 = vst [vmem:[%s1341 + $0x70] sm:$0xff] %v1358
                %v1360 = vld [vmem:[%s1340 + $0x48] sm:$0xff]
                %1361 = vst [vmem:[%s1341 + $0x78] sm:$0xff] %v1360
                %v1362 = vld [vmem:[%s1340 + $0x50] sm:$0xff]
                %1363 = vst [vmem:[%s1341 + $0x80] sm:$0xff] %v1362
                %v1364 = vld [vmem:[%s1340 + $0x58] sm:$0xff]
                %1365 = vst [vmem:[%s1341 + $0x88] sm:$0xff] %v1364
              $region61: #{g_block_forward.1} parent=55 // loop_footer
                %s1339 = sadd.s32 1, %s1335
              $region62: #{g_block_forward.1} parent=55 // loop_footer_branch
                %1334 = sbr.rel target = $region58
              $region63: #{g_block_forward.1} parent=55 // loop_exit
                _
            $region56: #{g_block_forward.1} parent=51 // pred_fallthru
              _
            // Predicated region
            $region64: #{g_block_forward.1} parent=51 // pred_check
              _
            $region65: #{g_block_forward.1} parent=51 // pred_check_branch
              %1367 = sbr.rel target = $region67
            $region66: #{g_block_forward.1} parent=51 // pred_region
              _
            $region67: #{g_block_forward.1} parent=51 // pred_fallthru
              _
          $region52: #{g_block_forward.1} parent=47 // pred_fallthru
            _
          %1368 = vnop
        $region48: #{g_block_forward.1} parent=39 // pred_fallthru
          _
      $region40: #{g_block_forward.1} parent=5 // pred_fallthru
        _
      %p1369 = scmp.le.s32.totalorder 2, %s12
      // Predicated region
      $region68: #{g_block_forward.1} parent=5 // pred_check
        %p1370 = pneg %p1369
      $region69: #{g_block_forward.1} parent=5 // pred_check_branch
        %1372 = sbr.rel (%p1370) target = $region71
      $region70: #{g_block_forward.1} parent=5 // pred_region
        %s1373 = ssub.s32 %s12, 2
        // Predicated region
        $region72: #{g_block_forward.1} parent=70 // pred_check
          %p1374 = pneg %p161
        $region73: #{g_block_forward.1} parent=70 // pred_check_branch
          %1376 = sbr.rel (%p1374) target = $region75
        $region74: #{g_block_forward.1} parent=70 // pred_region
          %s1377 = sand.u32 %s146, 1
          %s1378 = sand.u32 %s146, 1
          %s1379 = smul.addr %s1378, 96
          %s1380 = scalar_lea.vmem [#allocation5], %s1379
        $region75: #{g_block_forward.1} parent=70 // pred_fallthru
          _
      $region71: #{g_block_forward.1} parent=5 // pred_fallthru
        _
    $region6: #{g_block_forward.1} parent=1 // loop_footer
      %s16 = sadd.s32 1, %s12
    $region7: #{g_block_forward.1} parent=1 // loop_footer_branch
      %11 = sbr.rel target = $region3
    $region8: #{g_block_forward.1} parent=1 // loop_exit
      _
    %1381 = vsyncpa [#allocation4], 1
    %s1382 = scalar_lea.sflag [#allocation4], 1
    %1383 = vsyncpa %s1382, 1

</llo_original>
